<compile_context>
chip_gen: v5e
topology: v5e:2x2
jax: 0.10.0
libtpu: 0.0.40
codegen_flags: <defaults>
</compile_context>

<pallas_src>
import functools
import math

import jax
import jax.numpy as jnp
from jax import lax
from jax.experimental import pallas as pl
from jax.experimental.pallas import tpu as pltpu


# ---------------------------------------------------------------------------
# Kernels
# ---------------------------------------------------------------------------

def _attention_kernel_full(k_ref, q_ref, v_ref, wk_ref, wq_ref, wv_ref, wu_ref,
                           bu_ref, o_ref, keys_s, vals_s, qs_s, outs_s,
                           *, num_heads, head_dim):
    """One (batch, q-tile) step with the fully projected K/V resident in VMEM.

    K/V projections run once per batch (q-tile axis is "arbitrary"; the
    keys_s/vals_s scratch persists across its sequential steps).
    """
    H, E = num_heads, head_dim
    cdt = wk_ref.dtype  # MXU operand dtype (bf16 for f32 models); accum is f32

    # --- K/V projections: only at the first q-tile of each batch ------------
    @pl.when(pl.program_id(1) == 0)
    def _():
        keys_s[...] = jnp.dot(k_ref[0], wk_ref[...],
                              preferred_element_type=jnp.float32).astype(cdt)
        vals_s[...] = jnp.dot(v_ref[0], wv_ref[...],
                              preferred_element_type=jnp.float32).astype(cdt)

    # --- Q projection for this q-tile (wq pre-scaled by 1/sqrt(E)) ----------
    qs_s[...] = jnp.dot(q_ref[0], wq_ref[...],
                        preferred_element_type=jnp.float32).astype(cdt)

    # --- per-head scaled dot-product attention; softmax math stays in f32 ---
    # TODO(synk): if bundle dumps show vreg/VMEM spills at large tq*T, switch
    # this static unroll to lax.fori_loop(..., unroll=True).
    for h in range(H):
        sl = pl.ds(h * E, E)
        qh = qs_s[:, sl]                                             # (tq, E)
        kh = keys_s[:, sl]                                           # (T,  E)
        vh = vals_s[:, sl]                                           # (T,  E)
        # q @ k^T without an explicit transpose: contract last dims on the MXU.
        s = lax.dot_general(qh, kh, (((1,), (1,)), ((), ())),
                            preferred_element_type=jnp.float32)      # (tq, T)
        s = s - jnp.max(s, axis=-1, keepdims=True)
        p = jnp.exp(s)
        denom = jnp.sum(p, axis=-1, keepdims=True)                   # (tq, 1)
        oh = jnp.dot(p.astype(cdt), vh,
                     preferred_element_type=jnp.float32)             # (tq, E)
        # Deferred softmax normalization on the (tq, E) result (EUP reciprocal).
        outs_s[:, sl] = (oh * pl.reciprocal(denom, approx=True)).astype(cdt)

    # --- unify heads: one (tq, H*E) @ (H*E, E) matmul + bias -----------------
    unify = jnp.dot(outs_s[...], wu_ref[...],
                    preferred_element_type=jnp.float32)              # (tq, E)
    # Note: with E < 128 this store is a masked partial-lane vst; real configs
    # should use E that is a multiple of 128 for a lane-dense writeback.
    o_ref[0] = (unify + bu_ref[...]).astype(o_ref.dtype)


def _attention_kernel_flash(k_ref, q_ref, v_ref, wk_ref, wq_ref, wv_ref, wu_ref,
                            bu_ref, o_ref, qs_s, kt_s, vt_s, outs_s, m_s, l_s,
                            acc_s, *, num_heads, head_dim, kv_tile, num_kv):
    """Flash-style path: K/V projected per kv-tile, online softmax.

    Caps VMEM at O((tq + tkv) * H * E) instead of O(T * H * E), keeping long
    sequences viable under v7x's 64 MiB VMEM.
    """
    H, E = num_heads, head_dim
    cdt = wk_ref.dtype

    qs_s[...] = jnp.dot(q_ref[0], wq_ref[...],
                        preferred_element_type=jnp.float32).astype(cdt)

    m_s[...] = jnp.full(m_s.shape, -jnp.inf, dtype=m_s.dtype)
    l_s[...] = jnp.zeros(l_s.shape, dtype=l_s.dtype)
    acc_s[...] = jnp.zeros(acc_s.shape, dtype=acc_s.dtype)

    @pl.loop(0, num_kv)
    def _(step):
        start = pl.multiple_of(step * kv_tile, kv_tile)
        k_blk = k_ref[0, pl.ds(start, kv_tile), :]                    # (tkv, E)
        v_blk = v_ref[0, pl.ds(start, kv_tile), :]
        kt_s[...] = jnp.dot(k_blk, wk_ref[...],
                            preferred_element_type=jnp.float32).astype(cdt)
        vt_s[...] = jnp.dot(v_blk, wv_ref[...],
                            preferred_element_type=jnp.float32).astype(cdt)
        for h in range(H):
            sl = pl.ds(h * E, E)
            s = lax.dot_general(qs_s[:, sl], kt_s[:, sl],
                                (((1,), (1,)), ((), ())),
                                preferred_element_type=jnp.float32)   # (tq, tkv)
            m_prev = m_s[h]                                           # (tq, 1)
            m_new = jnp.maximum(m_prev, jnp.max(s, axis=-1, keepdims=True))
            alpha = jnp.exp(m_prev - m_new)
            p = jnp.exp(s - m_new)
            l_s[h] = alpha * l_s[h] + jnp.sum(p, axis=-1, keepdims=True)
            acc_s[:, sl] = alpha * acc_s[:, sl] + jnp.dot(
                p.astype(cdt), vt_s[:, sl], preferred_element_type=jnp.float32)
            m_s[h] = m_new

    for h in range(H):
        sl = pl.ds(h * E, E)
        outs_s[:, sl] = (acc_s[:, sl] *
                         pl.reciprocal(l_s[h], approx=True)).astype(cdt)

    unify = jnp.dot(outs_s[...], wu_ref[...],
                    preferred_element_type=jnp.float32)
    o_ref[0] = (unify + bu_ref[...]).astype(o_ref.dtype)


# ---------------------------------------------------------------------------
# Wrapper
# ---------------------------------------------------------------------------

def _vmem_capacity_bytes():
    try:
        return int(pltpu.get_tpu_info().vmem_capacity_bytes)
    except Exception:
        return 64 * 1024 * 1024  # conservative (v7x physical VMEM)


def _pick_tile(total, cap):
    """Largest tile <= cap dividing `total`; prefers multiples of 128 (MXU)."""
    if total <= cap:
        return total
    for step in (128, 8):
        t = cap - (cap % step)
        while t >= step:
            if total % t == 0:
                return t
            t -= step
    return total


def _full_path_vmem(T, tq, E, H, cb, ob):
    HE = H * E
    scratch = (2 * T + 2 * tq) * HE * cb            # keys/vals + qs/outs
    blocks = 2 * (2 * T * E + tq * E) * cb + 2 * tq * E * ob
    weights = (3 * E * HE + HE * E) * cb + E * 4
    score = tq * T * 4                               # (tq, T) f32 temporaries
    return scratch + blocks + weights + score


def _flash_path_vmem(T, tq, tkv, E, H, cb, ob):
    HE = H * E
    scratch = (2 * tq + 2 * tkv) * HE * cb + tq * HE * 4 + 2 * H * tq * 4
    blocks = 2 * (2 * T * E + tq * E) * cb + 2 * tq * E * ob
    weights = (3 * E * HE + HE * E) * cb + E * 4
    score = tq * tkv * 4
    return scratch + blocks + weights + score


def attention_pallas(k, q, v, wk, wq, wv, wu, bu, num_heads, *,
                     tq=None, tkv=None, flash=None, compute_dtype=None,
                     vmem_limit_bytes=None, single_buffer_weights=True):
    """k, q, v: (B, T, E).  Weights in PyTorch nn.Linear convention:
       wk/wq/wv: (H*E, E),  wu: (E, H*E),  bu: (E,)."""
    B, T, E = q.shape
    H = num_heads
    HE = H * E
    out_dtype = q.dtype

    # bf16 MXU operands for f32 models (f32 accumulation / softmax retained).
    if compute_dtype is None:
        compute_dtype = jnp.bfloat16 if q.dtype == jnp.float32 else q.dtype
    cdt = jnp.dtype(compute_dtype)
    cb = cdt.itemsize
    ob = jnp.dtype(out_dtype).itemsize

    if tq is None:
        tq = _pick_tile(T, 512)
    assert T % tq == 0 and (tq == T or tq % 8 == 0), "q-tile must divide T (8-aligned)"
    nq = T // tq

    if tkv is None:
        tkv = _pick_tile(T, 512)
    assert T % tkv == 0 and (tkv == T or tkv % 8 == 0), "kv-tile must divide T (8-aligned)"

    cap = _vmem_capacity_bytes()
    budget = int(0.75 * cap)             # leave headroom below physical VMEM
    if flash is None:
        flash = _full_path_vmem(T, tq, E, H, cb, ob) > budget
    est = (_flash_path_vmem(T, tq, tkv, E, H, cb, ob) if flash
           else _full_path_vmem(T, tq, E, H, cb, ob))
    if vmem_limit_bytes is None:
        vmem_limit_bytes = int(min(budget, max(32 * 1024 * 1024, 2 * est)))

    # nn.Linear computes y = x @ W.T; fuse all heads into one (E, H*E) operand.
    # Output column h*E + c corresponds to head h / channel c ('b t (h c)').
    # 1/sqrt(E) is folded into the Q weight (no per-score multiply).
    scale = 1.0 / math.sqrt(E)
    wk_f = wk.T.astype(cdt)                      # (E, H*E)
    wq_f = (wq.T * scale).astype(cdt)            # (E, H*E), pre-scaled
    wv_f = wv.T.astype(cdt)                      # (E, H*E)
    wu_f = wu.T.astype(cdt)                      # (H*E, E)
    bu_r = bu.reshape(1, E).astype(jnp.float32)  # bias added in f32
    k_c = k.astype(cdt)
    q_c = q.astype(cdt)
    v_c = v.astype(cdt)

    def build(weight_buffers):
        # Constant index maps -> each weight is DMA'd once and stays resident;
        # weight_buffers=1 drops the dead second pipeline buffer.
        wkw = ({"pipeline_mode": pl.Buffered(weight_buffers)}
               if weight_buffers is not None else {})
        kv_spec = pl.BlockSpec((1, T, E), lambda b, i: (b, 0, 0))
        q_spec = pl.BlockSpec((1, tq, E), lambda b, i: (b, i, 0))
        w_in_spec = pl.BlockSpec((E, HE), lambda b, i: (0, 0), **wkw)
        wu_spec = pl.BlockSpec((HE, E), lambda b, i: (0, 0), **wkw)
        bu_spec = pl.BlockSpec((1, E), lambda b, i: (0, 0), **wkw)
        out_spec = pl.BlockSpec((1, tq, E), lambda b, i: (b, i, 0))

        if flash:
            kernel = functools.partial(_attention_kernel_flash, num_heads=H,
                                       head_dim=E, kv_tile=tkv, num_kv=T // tkv)
            scratch = [
                pltpu.VMEM((tq, HE), cdt),             # projected queries
                pltpu.VMEM((tkv, HE), cdt),            # projected K tile
                pltpu.VMEM((tkv, HE), cdt),            # projected V tile
                pltpu.VMEM((tq, HE), cdt),             # normalized head outputs
                pltpu.VMEM((H, tq, 1), jnp.float32),   # running max
                pltpu.VMEM((H, tq, 1), jnp.float32),   # running sum
                pltpu.VMEM((tq, HE), jnp.float32),     # f32 accumulator
            ]
            # No cross-q-tile scratch dependence -> both axes shardable.
            dims = ("parallel", "parallel")
        else:
            kernel = functools.partial(_attention_kernel_full, num_heads=H,
                                       head_dim=E)
            scratch = [
                pltpu.VMEM((T, HE), cdt),    # projected keys (per batch)
                pltpu.VMEM((T, HE), cdt),    # projected values (per batch)
                pltpu.VMEM((tq, HE), cdt),   # projected queries (per tile)
                pltpu.VMEM((tq, HE), cdt),   # concatenated head outputs
            ]
            # q-tile axis MUST be sequential: keys/vals scratch written at
            # q-tile 0 is reused by later q-tiles of the same batch.
            dims = ("parallel", "arbitrary")

        return pl.pallas_call(
            kernel,
            out_shape=jax.ShapeDtypeStruct((B, T, E), out_dtype),
            grid_spec=pltpu.PrefetchScalarGridSpec(
                num_scalar_prefetch=0,
                grid=(B, nq),
                in_specs=[kv_spec, q_spec, kv_spec,
                          w_in_spec, w_in_spec, w_in_spec, wu_spec, bu_spec],
                out_specs=out_spec,
                scratch_shapes=scratch,
            ),
            compiler_params=pltpu.CompilerParams(
                dimension_semantics=dims,
                vmem_limit_bytes=vmem_limit_bytes,
            ),
        )

    args = (k_c, q_c, v_c, wk_f, wq_f, wv_f, wu_f, bu_r)
    if single_buffer_weights:
        try:
            return jax.block_until_ready(build(1)(*args))
        except Exception:
            pass  # Buffered(1) unsupported on this JAX -> default buffering.
    return build(None)(*args)


# ---------------------------------------------------------------------------
# Pure-JAX reference (mirrors the PyTorch module, eval mode, no mask)
# ---------------------------------------------------------------------------

def attention_ref(k, q, v, wk, wq, wv, wu, bu, num_heads):
    B, T, E = q.shape
    H = num_heads
    keys = k @ wk.T
    queries = q @ wq.T
    values = v @ wv.T

    def split(x):  # b t (h c) -> b h t c
        return x.reshape(B, T, H, E).transpose(0, 2, 1, 3)

    keys, queries, values = split(keys), split(queries), split(values)
    att = queries @ keys.transpose(0, 1, 3, 2)
    att = jax.nn.softmax(att / math.sqrt(E), axis=-1)
    out = att @ values
    out = out.transpose(0, 2, 1, 3).reshape(B, T, H * E)  # b h t c -> b t (h c)
    return out @ wu.T + bu


if __name__ == "__main__":
    E, H = 32, 4

    key = jax.random.PRNGKey(0)
    kwk, kwq, kwv, kwu, kbu, kdata = jax.random.split(key, 6)

    # Deterministic synthetic parameters (PyTorch nn.Linear weight convention).
    wk = jax.random.normal(kwk, (H * E, E), dtype=jnp.float32) * 0.05
    wq = jax.random.normal(kwq, (H * E, E), dtype=jnp.float32) * 0.05
    wv = jax.random.normal(kwv, (H * E, E), dtype=jnp.float32) * 0.05
    wu = jax.random.normal(kwu, (E, H * E), dtype=jnp.float32) * 0.05
    bu = jax.random.normal(kbu, (E,), dtype=jnp.float32) * 0.05

    def check(B, T, atol, rtol, **kw):
        kk, kq, kv_, _ = jax.random.split(jax.random.fold_in(kdata, T), 4)
        k_in = jax.random.normal(kk, (B, T, E), dtype=jnp.float32)
        q_in = jax.random.normal(kq, (B, T, E), dtype=jnp.float32)
        v_in = jax.random.normal(kv_, (B, T, E), dtype=jnp.float32)
        out = attention_pallas(k_in, q_in, v_in, wk, wq, wv, wu, bu, H, **kw)
        out = jax.block_until_ready(out)
        ref = attention_ref(k_in, q_in, v_in, wk, wq, wv, wu, bu, H)
        assert out.shape == (B, T, E)
        err = jnp.max(jnp.abs(out - ref))
        assert jnp.allclose(out, ref, atol=atol, rtol=rtol), f"max abs err = {err}"

    # Small default config (full K/V path, single q-tile); bf16 MXU operands.
    check(2, 8, atol=2.5e-2, rtol=2.5e-2)
    # Multi q-tile full path: exercises the per-batch K/V projection hoist.
    check(2, 64, atol=2.5e-2, rtol=2.5e-2, tq=32, flash=False)
    # Flash path: online softmax over 4 kv tiles (v7x long-sequence mode).
    check(2, 64, atol=2.5e-2, rtol=2.5e-2, tq=32, tkv=16, flash=True)
    # Full-precision path (no bf16 downcast) with tighter tolerance.
    check(2, 8, atol=5e-3, rtol=5e-3, compute_dtype=jnp.float32)

    print("KERNEL_OK")
</pallas_src>

<mosaic_0001>
module attributes {stable_mosaic.version = 11 : i64} {
  func.func @_attention_kernel_full(%arg0: i32, %arg1: i32, %arg2: memref<1x8x32xbf16, #tpu.memory_space<vmem>>, %arg3: memref<1x8x32xbf16, #tpu.memory_space<vmem>>, %arg4: memref<1x8x32xbf16, #tpu.memory_space<vmem>>, %arg5: memref<32x128xbf16, #tpu.memory_space<vmem>>, %arg6: memref<32x128xbf16, #tpu.memory_space<vmem>>, %arg7: memref<32x128xbf16, #tpu.memory_space<vmem>>, %arg8: memref<128x32xbf16, #tpu.memory_space<vmem>>, %arg9: memref<1x32xf32, #tpu.memory_space<vmem>>, %arg10: memref<1x8x32xf32, #tpu.memory_space<vmem>>, %arg11: memref<8x128xbf16, #tpu.memory_space<vmem>>, %arg12: memref<8x128xbf16, #tpu.memory_space<vmem>>, %arg13: memref<8x128xbf16, #tpu.memory_space<vmem>>, %arg14: memref<8x128xbf16, #tpu.memory_space<vmem>>) attributes {dimension_semantics = [#tpu.dimension_semantics<parallel>, #tpu.dimension_semantics<arbitrary>], iteration_bounds = array<i64: 2, 1>, scalar_prefetch = 0 : i64, scratch_operands = 4 : i64, tpu.core_type = #tpu.core_type<tc>, window_params = [{transform_indices = @transform_0, window_bounds = array<i64: 1, 8, 32>}, {transform_indices = @transform_1, window_bounds = array<i64: 1, 8, 32>}, {transform_indices = @transform_2, window_bounds = array<i64: 1, 8, 32>}, {pipeline_mode = #tpu.pipeline_mode<synchronous>, transform_indices = @transform_3, window_bounds = array<i64: 32, 128>}, {pipeline_mode = #tpu.pipeline_mode<synchronous>, transform_indices = @transform_4, window_bounds = array<i64: 32, 128>}, {pipeline_mode = #tpu.pipeline_mode<synchronous>, transform_indices = @transform_5, window_bounds = array<i64: 32, 128>}, {pipeline_mode = #tpu.pipeline_mode<synchronous>, transform_indices = @transform_6, window_bounds = array<i64: 128, 32>}, {pipeline_mode = #tpu.pipeline_mode<synchronous>, transform_indices = @transform_7, window_bounds = array<i64: 1, 32>}, {transform_indices = @transform_8, window_bounds = array<i64: 1, 8, 32>}]} {
    %c0_i32 = arith.constant 0 : i32
    %0 = arith.cmpi eq, %arg1, %c0_i32 : i32
    %1 = arith.extui %0 : i1 to i32
    %c0_i32_0 = arith.constant 0 : i32
    %2 = arith.cmpi ne, %1, %c0_i32_0 : i32
    scf.if %2 {
      %c0_62 = arith.constant 0 : index
      %c0_63 = arith.constant 0 : index
      %c0_64 = arith.constant 0 : index
      %90 = vector.load %arg2[%c0_62, %c0_63, %c0_64] : memref<1x8x32xbf16, #tpu.memory_space<vmem>>, vector<1x8x32xbf16>
      %91 = vector.shape_cast %90 : vector<1x8x32xbf16> to vector<8x32xbf16>
      %c0_65 = arith.constant 0 : index
      %c0_66 = arith.constant 0 : index
      %92 = vector.load %arg5[%c0_65, %c0_66] : memref<32x128xbf16, #tpu.memory_space<vmem>>, vector<32x128xbf16>
      %cst_67 = arith.constant dense<0.000000e+00> : vector<8x128xf32>
      %93 = tpu.matmul %91, %92, %cst_67 {dimension_numbers = #tpu.dot_dimension_numbers<[1], [0], [0], [1], [0, 0, 1, 1], [], []>} : vector<8x32xbf16>, vector<32x128xbf16>, vector<8x128xf32> -> vector<8x128xf32>
      %94 = arith.truncf %93 : vector<8x128xf32> to vector<8x128xbf16>
      %c0_68 = arith.constant 0 : index
      %c0_69 = arith.constant 0 : index
      %95 = vector.load %arg11[%c0_68, %c0_69] : memref<8x128xbf16, #tpu.memory_space<vmem>>, vector<8x128xbf16>
      tpu.vector_store %arg11[%c0_68, %c0_69], %94 {strides = array<i32>} : memref<8x128xbf16, #tpu.memory_space<vmem>>, vector<8x128xbf16>,
      %c0_70 = arith.constant 0 : index
      %c0_71 = arith.constant 0 : index
      %c0_72 = arith.constant 0 : index
      %96 = vector.load %arg4[%c0_70, %c0_71, %c0_72] : memref<1x8x32xbf16, #tpu.memory_space<vmem>>, vector<1x8x32xbf16>
      %97 = vector.shape_cast %96 : vector<1x8x32xbf16> to vector<8x32xbf16>
      %c0_73 = arith.constant 0 : index
      %c0_74 = arith.constant 0 : index
      %98 = vector.load %arg7[%c0_73, %c0_74] : memref<32x128xbf16, #tpu.memory_space<vmem>>, vector<32x128xbf16>
      %cst_75 = arith.constant dense<0.000000e+00> : vector<8x128xf32>
      %99 = tpu.matmul %97, %98, %cst_75 {dimension_numbers = #tpu.dot_dimension_numbers<[1], [0], [0], [1], [0, 0, 1, 1], [], []>} : vector<8x32xbf16>, vector<32x128xbf16>, vector<8x128xf32> -> vector<8x128xf32>
      %100 = arith.truncf %99 : vector<8x128xf32> to vector<8x128xbf16>
      %c0_76 = arith.constant 0 : index
      %c0_77 = arith.constant 0 : index
      %101 = vector.load %arg12[%c0_76, %c0_77] : memref<8x128xbf16, #tpu.memory_space<vmem>>, vector<8x128xbf16>
      tpu.vector_store %arg12[%c0_76, %c0_77], %100 {strides = array<i32>} : memref<8x128xbf16, #tpu.memory_space<vmem>>, vector<8x128xbf16>,
    } else {
    }
    %c0 = arith.constant 0 : index
    %c0_1 = arith.constant 0 : index
    %c0_2 = arith.constant 0 : index
    %3 = vector.load %arg3[%c0, %c0_1, %c0_2] : memref<1x8x32xbf16, #tpu.memory_space<vmem>>, vector<1x8x32xbf16>
    %4 = vector.shape_cast %3 : vector<1x8x32xbf16> to vector<8x32xbf16>
    %c0_3 = arith.constant 0 : index
    %c0_4 = arith.constant 0 : index
    %5 = vector.load %arg6[%c0_3, %c0_4] : memref<32x128xbf16, #tpu.memory_space<vmem>>, vector<32x128xbf16>
    %cst = arith.constant dense<0.000000e+00> : vector<8x128xf32>
    %6 = tpu.matmul %4, %5, %cst {dimension_numbers = #tpu.dot_dimension_numbers<[1], [0], [0], [1], [0, 0, 1, 1], [], []>} : vector<8x32xbf16>, vector<32x128xbf16>, vector<8x128xf32> -> vector<8x128xf32>
    %7 = arith.truncf %6 : vector<8x128xf32> to vector<8x128xbf16>
    %c0_5 = arith.constant 0 : index
    %c0_6 = arith.constant 0 : index
    %8 = vector.load %arg13[%c0_5, %c0_6] : memref<8x128xbf16, #tpu.memory_space<vmem>>, vector<8x128xbf16>
    tpu.vector_store %arg13[%c0_5, %c0_6], %7 {strides = array<i32>} : memref<8x128xbf16, #tpu.memory_space<vmem>>, vector<8x128xbf16>,
    %c0_7 = arith.constant 0 : index
    %c0_8 = arith.constant 0 : index
    %9 = vector.load %arg13[%c0_7, %c0_8] : memref<8x128xbf16, #tpu.memory_space<vmem>>, vector<8x32xbf16>
    %c0_9 = arith.constant 0 : index
    %c0_10 = arith.constant 0 : index
    %10 = vector.load %arg11[%c0_9, %c0_10] : memref<8x128xbf16, #tpu.memory_space<vmem>>, vector<8x32xbf16>
    %c0_11 = arith.constant 0 : index
    %c0_12 = arith.constant 0 : index
    %11 = vector.load %arg12[%c0_11, %c0_12] : memref<8x128xbf16, #tpu.memory_space<vmem>>, vector<8x32xbf16>
    %cst_13 = arith.constant dense<0.000000e+00> : vector<8x8xf32>
    %12 = tpu.matmul %9, %10, %cst_13 {dimension_numbers = #tpu.dot_dimension_numbers<[1], [1], [0], [0], [0, 0, 1, 0], [], []>} : vector<8x32xbf16>, vector<8x32xbf16>, vector<8x8xf32> -> vector<8x8xf32>
    %cst_14 = arith.constant dense<0xFF800000> : vector<8xf32>
    %13 = vector.multi_reduction <maximumf>, %12, %cst_14 [1] : vector<8x8xf32> to vector<8xf32>
    %14 = vector.shape_cast %13 : vector<8xf32> to vector<8x1xf32>
    %15 = vector.broadcast %14 : vector<8x1xf32> to vector<8x8xf32>
    %16 = arith.subf %12, %15 : vector<8x8xf32>
    %17 = math.exp %16 : vector<8x8xf32>
    %cst_15 = arith.constant dense<0.000000e+00> : vector<8xf32>
    %18 = vector.multi_reduction <add>, %17, %cst_15 [1] : vector<8x8xf32> to vector<8xf32>
    %19 = vector.shape_cast %18 : vector<8xf32> to vector<8x1xf32>
    %20 = arith.truncf %17 : vector<8x8xf32> to vector<8x8xbf16>
    %cst_16 = arith.constant dense<0.000000e+00> : vector<8x32xf32>
    %21 = tpu.matmul %20, %11, %cst_16 {dimension_numbers = #tpu.dot_dimension_numbers<[1], [0], [0], [1], [0, 0, 1, 1], [], []>} : vector<8x8xbf16>, vector<8x32xbf16>, vector<8x32xf32> -> vector<8x32xf32>
    %22 = tpu.reciprocal %19 {approx = true} : vector<8x1xf32> -> vector<8x1xf32>
    %23 = vector.broadcast %22 : vector<8x1xf32> to vector<8x32xf32>
    %24 = arith.mulf %21, %23 : vector<8x32xf32>
    %25 = arith.truncf %24 : vector<8x32xf32> to vector<8x32xbf16>
    %c0_17 = arith.constant 0 : index
    %c0_18 = arith.constant 0 : index
    %26 = vector.load %arg14[%c0_17, %c0_18] : memref<8x128xbf16, #tpu.memory_space<vmem>>, vector<8x32xbf16>
    tpu.vector_store %arg14[%c0_17, %c0_18], %25 {strides = array<i32>} : memref<8x128xbf16, #tpu.memory_space<vmem>>, vector<8x32xbf16>,
    %c0_19 = arith.constant 0 : index
    %c32 = arith.constant 32 : index
    %27 = vector.load %arg13[%c0_19, %c32] : memref<8x128xbf16, #tpu.memory_space<vmem>>, vector<8x32xbf16>
    %c0_20 = arith.constant 0 : index
    %c32_21 = arith.constant 32 : index
    %28 = vector.load %arg11[%c0_20, %c32_21] : memref<8x128xbf16, #tpu.memory_space<vmem>>, vector<8x32xbf16>
    %c0_22 = arith.constant 0 : index
    %c32_23 = arith.constant 32 : index
    %29 = vector.load %arg12[%c0_22, %c32_23] : memref<8x128xbf16, #tpu.memory_space<vmem>>, vector<8x32xbf16>
    %cst_24 = arith.constant dense<0.000000e+00> : vector<8x8xf32>
    %30 = tpu.matmul %27, %28, %cst_24 {dimension_numbers = #tpu.dot_dimension_numbers<[1], [1], [0], [0], [0, 0, 1, 0], [], []>} : vector<8x32xbf16>, vector<8x32xbf16>, vector<8x8xf32> -> vector<8x8xf32>
    %cst_25 = arith.constant dense<0xFF800000> : vector<8xf32>
    %31 = vector.multi_reduction <maximumf>, %30, %cst_25 [1] : vector<8x8xf32> to vector<8xf32>
    %32 = vector.shape_cast %31 : vector<8xf32> to vector<8x1xf32>
    %33 = vector.broadcast %32 : vector<8x1xf32> to vector<8x8xf32>
    %34 = arith.subf %30, %33 : vector<8x8xf32>
    %35 = math.exp %34 : vector<8x8xf32>
    %cst_26 = arith.constant dense<0.000000e+00> : vector<8xf32>
    %36 = vector.multi_reduction <add>, %35, %cst_26 [1] : vector<8x8xf32> to vector<8xf32>
    %37 = vector.shape_cast %36 : vector<8xf32> to vector<8x1xf32>
    %38 = arith.truncf %35 : vector<8x8xf32> to vector<8x8xbf16>
    %cst_27 = arith.constant dense<0.000000e+00> : vector<8x32xf32>
    %39 = tpu.matmul %38, %29, %cst_27 {dimension_numbers = #tpu.dot_dimension_numbers<[1], [0], [0], [1], [0, 0, 1, 1], [], []>} : vector<8x8xbf16>, vector<8x32xbf16>, vector<8x32xf32> -> vector<8x32xf32>
    %40 = tpu.reciprocal %37 {approx = true} : vector<8x1xf32> -> vector<8x1xf32>
    %41 = vector.broadcast %40 : vector<8x1xf32> to vector<8x32xf32>
    %42 = arith.mulf %39, %41 : vector<8x32xf32>
    %43 = arith.truncf %42 : vector<8x32xf32> to vector<8x32xbf16>
    %c0_28 = arith.constant 0 : index
    %c32_29 = arith.constant 32 : index
    %44 = vector.load %arg14[%c0_28, %c32_29] : memref<8x128xbf16, #tpu.memory_space<vmem>>, vector<8x32xbf16>
    tpu.vector_store %arg14[%c0_28, %c32_29], %43 {strides = array<i32>} : memref<8x128xbf16, #tpu.memory_space<vmem>>, vector<8x32xbf16>,
    %c0_30 = arith.constant 0 : index
    %c64 = arith.constant 64 : index
    %45 = vector.load %arg13[%c0_30, %c64] : memref<8x128xbf16, #tpu.memory_space<vmem>>, vector<8x32xbf16>
    %c0_31 = arith.constant 0 : index
    %c64_32 = arith.constant 64 : index
    %46 = vector.load %arg11[%c0_31, %c64_32] : memref<8x128xbf16, #tpu.memory_space<vmem>>, vector<8x32xbf16>
    %c0_33 = arith.constant 0 : index
    %c64_34 = arith.constant 64 : index
    %47 = vector.load %arg12[%c0_33, %c64_34] : memref<8x128xbf16, #tpu.memory_space<vmem>>, vector<8x32xbf16>
    %cst_35 = arith.constant dense<0.000000e+00> : vector<8x8xf32>
    %48 = tpu.matmul %45, %46, %cst_35 {dimension_numbers = #tpu.dot_dimension_numbers<[1], [1], [0], [0], [0, 0, 1, 0], [], []>} : vector<8x32xbf16>, vector<8x32xbf16>, vector<8x8xf32> -> vector<8x8xf32>
    %cst_36 = arith.constant dense<0xFF800000> : vector<8xf32>
    %49 = vector.multi_reduction <maximumf>, %48, %cst_36 [1] : vector<8x8xf32> to vector<8xf32>
    %50 = vector.shape_cast %49 : vector<8xf32> to vector<8x1xf32>
    %51 = vector.broadcast %50 : vector<8x1xf32> to vector<8x8xf32>
    %52 = arith.subf %48, %51 : vector<8x8xf32>
    %53 = math.exp %52 : vector<8x8xf32>
    %cst_37 = arith.constant dense<0.000000e+00> : vector<8xf32>
    %54 = vector.multi_reduction <add>, %53, %cst_37 [1] : vector<8x8xf32> to vector<8xf32>
    %55 = vector.shape_cast %54 : vector<8xf32> to vector<8x1xf32>
    %56 = arith.truncf %53 : vector<8x8xf32> to vector<8x8xbf16>
    %cst_38 = arith.constant dense<0.000000e+00> : vector<8x32xf32>
    %57 = tpu.matmul %56, %47, %cst_38 {dimension_numbers = #tpu.dot_dimension_numbers<[1], [0], [0], [1], [0, 0, 1, 1], [], []>} : vector<8x8xbf16>, vector<8x32xbf16>, vector<8x32xf32> -> vector<8x32xf32>
    %58 = tpu.reciprocal %55 {approx = true} : vector<8x1xf32> -> vector<8x1xf32>
    %59 = vector.broadcast %58 : vector<8x1xf32> to vector<8x32xf32>
    %60 = arith.mulf %57, %59 : vector<8x32xf32>
    %61 = arith.truncf %60 : vector<8x32xf32> to vector<8x32xbf16>
    %c0_39 = arith.constant 0 : index
    %c64_40 = arith.constant 64 : index
    %62 = vector.load %arg14[%c0_39, %c64_40] : memref<8x128xbf16, #tpu.memory_space<vmem>>, vector<8x32xbf16>
    tpu.vector_store %arg14[%c0_39, %c64_40], %61 {strides = array<i32>} : memref<8x128xbf16, #tpu.memory_space<vmem>>, vector<8x32xbf16>,
    %c0_41 = arith.constant 0 : index
    %c96 = arith.constant 96 : index
    %63 = vector.load %arg13[%c0_41, %c96] : memref<8x128xbf16, #tpu.memory_space<vmem>>, vector<8x32xbf16>
    %c0_42 = arith.constant 0 : index
    %c96_43 = arith.constant 96 : index
    %64 = vector.load %arg11[%c0_42, %c96_43] : memref<8x128xbf16, #tpu.memory_space<vmem>>, vector<8x32xbf16>
    %c0_44 = arith.constant 0 : index
    %c96_45 = arith.constant 96 : index
    %65 = vector.load %arg12[%c0_44, %c96_45] : memref<8x128xbf16, #tpu.memory_space<vmem>>, vector<8x32xbf16>
    %cst_46 = arith.constant dense<0.000000e+00> : vector<8x8xf32>
    %66 = tpu.matmul %63, %64, %cst_46 {dimension_numbers = #tpu.dot_dimension_numbers<[1], [1], [0], [0], [0, 0, 1, 0], [], []>} : vector<8x32xbf16>, vector<8x32xbf16>, vector<8x8xf32> -> vector<8x8xf32>
    %cst_47 = arith.constant dense<0xFF800000> : vector<8xf32>
    %67 = vector.multi_reduction <maximumf>, %66, %cst_47 [1] : vector<8x8xf32> to vector<8xf32>
    %68 = vector.shape_cast %67 : vector<8xf32> to vector<8x1xf32>
    %69 = vector.broadcast %68 : vector<8x1xf32> to vector<8x8xf32>
    %70 = arith.subf %66, %69 : vector<8x8xf32>
    %71 = math.exp %70 : vector<8x8xf32>
    %cst_48 = arith.constant dense<0.000000e+00> : vector<8xf32>
    %72 = vector.multi_reduction <add>, %71, %cst_48 [1] : vector<8x8xf32> to vector<8xf32>
    %73 = vector.shape_cast %72 : vector<8xf32> to vector<8x1xf32>
    %74 = arith.truncf %71 : vector<8x8xf32> to vector<8x8xbf16>
    %cst_49 = arith.constant dense<0.000000e+00> : vector<8x32xf32>
    %75 = tpu.matmul %74, %65, %cst_49 {dimension_numbers = #tpu.dot_dimension_numbers<[1], [0], [0], [1], [0, 0, 1, 1], [], []>} : vector<8x8xbf16>, vector<8x32xbf16>, vector<8x32xf32> -> vector<8x32xf32>
    %76 = tpu.reciprocal %73 {approx = true} : vector<8x1xf32> -> vector<8x1xf32>
    %77 = vector.broadcast %76 : vector<8x1xf32> to vector<8x32xf32>
    %78 = arith.mulf %75, %77 : vector<8x32xf32>
    %79 = arith.truncf %78 : vector<8x32xf32> to vector<8x32xbf16>
    %c0_50 = arith.constant 0 : index
    %c96_51 = arith.constant 96 : index
    %80 = vector.load %arg14[%c0_50, %c96_51] : memref<8x128xbf16, #tpu.memory_space<vmem>>, vector<8x32xbf16>
    tpu.vector_store %arg14[%c0_50, %c96_51], %79 {strides = array<i32>} : memref<8x128xbf16, #tpu.memory_space<vmem>>, vector<8x32xbf16>,
    %c0_52 = arith.constant 0 : index
    %c0_53 = arith.constant 0 : index
    %81 = vector.load %arg14[%c0_52, %c0_53] : memref<8x128xbf16, #tpu.memory_space<vmem>>, vector<8x128xbf16>
    %c0_54 = arith.constant 0 : index
    %c0_55 = arith.constant 0 : index
    %82 = vector.load %arg8[%c0_54, %c0_55] : memref<128x32xbf16, #tpu.memory_space<vmem>>, vector<128x32xbf16>
    %cst_56 = arith.constant dense<0.000000e+00> : vector<8x32xf32>
    %83 = tpu.matmul %81, %82, %cst_56 {dimension_numbers = #tpu.dot_dimension_numbers<[1], [0], [0], [1], [0, 0, 1, 1], [], []>} : vector<8x128xbf16>, vector<128x32xbf16>, vector<8x32xf32> -> vector<8x32xf32>
    %c0_57 = arith.constant 0 : index
    %c0_58 = arith.constant 0 : index
    %84 = vector.load %arg9[%c0_57, %c0_58] : memref<1x32xf32, #tpu.memory_space<vmem>>, vector<1x32xf32>
    %85 = vector.broadcast %84 : vector<1x32xf32> to vector<8x32xf32>
    %86 = arith.addf %83, %85 : vector<8x32xf32>
    %c0_59 = arith.constant 0 : index
    %c0_60 = arith.constant 0 : index
    %c0_61 = arith.constant 0 : index
    %87 = vector.load %arg10[%c0_59, %c0_60, %c0_61] : memref<1x8x32xf32, #tpu.memory_space<vmem>>, vector<1x8x32xf32>
    %88 = vector.shape_cast %87 : vector<1x8x32xf32> to vector<8x32xf32>
    %89 = vector.shape_cast %86 : vector<8x32xf32> to vector<1x8x32xf32>
    tpu.vector_store %arg10[%c0_59, %c0_60, %c0_61], %89 {strides = array<i32>} : memref<1x8x32xf32, #tpu.memory_space<vmem>>, vector<1x8x32xf32>,
    return
  }
  func.func @transform_0(%arg0: i32, %arg1: i32) -> (i32, i32, i32) {
    %c0_i32 = arith.constant 0 : i32
    %c0_i32_0 = arith.constant 0 : i32
    %c0_i32_1 = arith.constant 0 : i32
    return %arg0, %c0_i32, %c0_i32_0 : i32, i32, i32
  }
  func.func @transform_1(%arg0: i32, %arg1: i32) -> (i32, i32, i32) {
    %c0_i32 = arith.constant 0 : i32
    %c0_i32_0 = arith.constant 0 : i32
    return %arg0, %arg1, %c0_i32 : i32, i32, i32
  }
  func.func @transform_2(%arg0: i32, %arg1: i32) -> (i32, i32, i32) {
    %c0_i32 = arith.constant 0 : i32
    %c0_i32_0 = arith.constant 0 : i32
    %c0_i32_1 = arith.constant 0 : i32
    return %arg0, %c0_i32, %c0_i32_0 : i32, i32, i32
  }
  func.func @transform_3(%arg0: i32, %arg1: i32) -> (i32, i32) {
    %c0_i32 = arith.constant 0 : i32
    %c0_i32_0 = arith.constant 0 : i32
    %c0_i32_1 = arith.constant 0 : i32
    return %c0_i32, %c0_i32_0 : i32, i32
  }
  func.func @transform_4(%arg0: i32, %arg1: i32) -> (i32, i32) {
    %c0_i32 = arith.constant 0 : i32
    %c0_i32_0 = arith.constant 0 : i32
    %c0_i32_1 = arith.constant 0 : i32
    return %c0_i32, %c0_i32_0 : i32, i32
  }
  func.func @transform_5(%arg0: i32, %arg1: i32) -> (i32, i32) {
    %c0_i32 = arith.constant 0 : i32
    %c0_i32_0 = arith.constant 0 : i32
    %c0_i32_1 = arith.constant 0 : i32
    return %c0_i32, %c0_i32_0 : i32, i32
  }
  func.func @transform_6(%arg0: i32, %arg1: i32) -> (i32, i32) {
    %c0_i32 = arith.constant 0 : i32
    %c0_i32_0 = arith.constant 0 : i32
    %c0_i32_1 = arith.constant 0 : i32
    return %c0_i32, %c0_i32_0 : i32, i32
  }
  func.func @transform_7(%arg0: i32, %arg1: i32) -> (i32, i32) {
    %c0_i32 = arith.constant 0 : i32
    %c0_i32_0 = arith.constant 0 : i32
    %c0_i32_1 = arith.constant 0 : i32
    return %c0_i32, %c0_i32_0 : i32, i32
  }
  func.func @transform_8(%arg0: i32, %arg1: i32) -> (i32, i32, i32) {
    %c0_i32 = arith.constant 0 : i32
    %c0_i32_0 = arith.constant 0 : i32
    return %arg0, %arg1, %c0_i32 : i32, i32, i32
  }
}

module attributes {stable_mosaic.version = 11 : i64} {
  func.func @_attention_kernel_full(%arg0: i32, %arg1: i32, %arg2: memref<1x8x32xbf16, #tpu.memory_space<vmem>>, %arg3: memref<1x8x32xbf16, #tpu.memory_space<vmem>>, %arg4: memref<1x8x32xbf16, #tpu.memory_space<vmem>>, %arg5: memref<32x128xbf16, #tpu.memory_space<vmem>>, %arg6: memref<32x128xbf16, #tpu.memory_space<vmem>>, %arg7: memref<32x128xbf16, #tpu.memory_space<vmem>>, %arg8: memref<128x32xbf16, #tpu.memory_space<vmem>>, %arg9: memref<1x32xf32, #tpu.memory_space<vmem>>, %arg10: memref<1x8x32xf32, #tpu.memory_space<vmem>>, %arg11: memref<8x128xbf16, #tpu.memory_space<vmem>>, %arg12: memref<8x128xbf16, #tpu.memory_space<vmem>>, %arg13: memref<8x128xbf16, #tpu.memory_space<vmem>>, %arg14: memref<8x128xbf16, #tpu.memory_space<vmem>>) attributes {dimension_semantics = [#tpu.dimension_semantics<parallel>, #tpu.dimension_semantics<arbitrary>], iteration_bounds = array<i64: 2, 1>, scalar_prefetch = 0 : i64, scratch_operands = 4 : i64, tpu.core_type = #tpu.core_type<tc>, window_params = [{transform_indices = @transform_0, window_bounds = array<i64: 1, 8, 32>}, {transform_indices = @transform_1, window_bounds = array<i64: 1, 8, 32>}, {transform_indices = @transform_2, window_bounds = array<i64: 1, 8, 32>}, {pipeline_mode = #tpu.pipeline_mode<synchronous>, transform_indices = @transform_3, window_bounds = array<i64: 32, 128>}, {pipeline_mode = #tpu.pipeline_mode<synchronous>, transform_indices = @transform_4, window_bounds = array<i64: 32, 128>}, {pipeline_mode = #tpu.pipeline_mode<synchronous>, transform_indices = @transform_5, window_bounds = array<i64: 32, 128>}, {pipeline_mode = #tpu.pipeline_mode<synchronous>, transform_indices = @transform_6, window_bounds = array<i64: 128, 32>}, {pipeline_mode = #tpu.pipeline_mode<synchronous>, transform_indices = @transform_7, window_bounds = array<i64: 1, 32>}, {transform_indices = @transform_8, window_bounds = array<i64: 1, 8, 32>}]} {
    %c0_i32 = arith.constant 0 : i32
    %0 = arith.cmpi eq, %arg1, %c0_i32 : i32
    %1 = arith.extui %0 : i1 to i32
    %c0_i32_0 = arith.constant 0 : i32
    %2 = arith.cmpi ne, %1, %c0_i32_0 : i32
    scf.if %2 {
      %c0_62 = arith.constant 0 : index
      %c0_63 = arith.constant 0 : index
      %c0_64 = arith.constant 0 : index
      %90 = vector.load %arg2[%c0_62, %c0_63, %c0_64] : memref<1x8x32xbf16, #tpu.memory_space<vmem>>, vector<1x8x32xbf16>
      %91 = vector.shape_cast %90 : vector<1x8x32xbf16> to vector<8x32xbf16>
      %c0_65 = arith.constant 0 : index
      %c0_66 = arith.constant 0 : index
      %92 = vector.load %arg5[%c0_65, %c0_66] : memref<32x128xbf16, #tpu.memory_space<vmem>>, vector<32x128xbf16>
      %cst_67 = arith.constant dense<0.000000e+00> : vector<8x128xf32>
      %93 = tpu.matmul %91, %92, %cst_67 {dimension_numbers = #tpu.dot_dimension_numbers<[1], [0], [0], [1], [0, 0, 1, 1], [], []>} : vector<8x32xbf16>, vector<32x128xbf16>, vector<8x128xf32> -> vector<8x128xf32>
      %94 = arith.truncf %93 : vector<8x128xf32> to vector<8x128xbf16>
      %c0_68 = arith.constant 0 : index
      %c0_69 = arith.constant 0 : index
      %95 = vector.load %arg11[%c0_68, %c0_69] : memref<8x128xbf16, #tpu.memory_space<vmem>>, vector<8x128xbf16>
      tpu.vector_store %arg11[%c0_68, %c0_69], %94 {strides = array<i32>} : memref<8x128xbf16, #tpu.memory_space<vmem>>, vector<8x128xbf16>,
      %c0_70 = arith.constant 0 : index
      %c0_71 = arith.constant 0 : index
      %c0_72 = arith.constant 0 : index
      %96 = vector.load %arg4[%c0_70, %c0_71, %c0_72] : memref<1x8x32xbf16, #tpu.memory_space<vmem>>, vector<1x8x32xbf16>
      %97 = vector.shape_cast %96 : vector<1x8x32xbf16> to vector<8x32xbf16>
      %c0_73 = arith.constant 0 : index
      %c0_74 = arith.constant 0 : index
      %98 = vector.load %arg7[%c0_73, %c0_74] : memref<32x128xbf16, #tpu.memory_space<vmem>>, vector<32x128xbf16>
      %cst_75 = arith.constant dense<0.000000e+00> : vector<8x128xf32>
      %99 = tpu.matmul %97, %98, %cst_75 {dimension_numbers = #tpu.dot_dimension_numbers<[1], [0], [0], [1], [0, 0, 1, 1], [], []>} : vector<8x32xbf16>, vector<32x128xbf16>, vector<8x128xf32> -> vector<8x128xf32>
      %100 = arith.truncf %99 : vector<8x128xf32> to vector<8x128xbf16>
      %c0_76 = arith.constant 0 : index
      %c0_77 = arith.constant 0 : index
      %101 = vector.load %arg12[%c0_76, %c0_77] : memref<8x128xbf16, #tpu.memory_space<vmem>>, vector<8x128xbf16>
      tpu.vector_store %arg12[%c0_76, %c0_77], %100 {strides = array<i32>} : memref<8x128xbf16, #tpu.memory_space<vmem>>, vector<8x128xbf16>,
    } else {
    }
    %c0 = arith.constant 0 : index
    %c0_1 = arith.constant 0 : index
    %c0_2 = arith.constant 0 : index
    %3 = vector.load %arg3[%c0, %c0_1, %c0_2] : memref<1x8x32xbf16, #tpu.memory_space<vmem>>, vector<1x8x32xbf16>
    %4 = vector.shape_cast %3 : vector<1x8x32xbf16> to vector<8x32xbf16>
    %c0_3 = arith.constant 0 : index
    %c0_4 = arith.constant 0 : index
    %5 = vector.load %arg6[%c0_3, %c0_4] : memref<32x128xbf16, #tpu.memory_space<vmem>>, vector<32x128xbf16>
    %cst = arith.constant dense<0.000000e+00> : vector<8x128xf32>
    %6 = tpu.matmul %4, %5, %cst {dimension_numbers = #tpu.dot_dimension_numbers<[1], [0], [0], [1], [0, 0, 1, 1], [], []>} : vector<8x32xbf16>, vector<32x128xbf16>, vector<8x128xf32> -> vector<8x128xf32>
    %7 = arith.truncf %6 : vector<8x128xf32> to vector<8x128xbf16>
    %c0_5 = arith.constant 0 : index
    %c0_6 = arith.constant 0 : index
    %8 = vector.load %arg13[%c0_5, %c0_6] : memref<8x128xbf16, #tpu.memory_space<vmem>>, vector<8x128xbf16>
    tpu.vector_store %arg13[%c0_5, %c0_6], %7 {strides = array<i32>} : memref<8x128xbf16, #tpu.memory_space<vmem>>, vector<8x128xbf16>,
    %c0_7 = arith.constant 0 : index
    %c0_8 = arith.constant 0 : index
    %9 = vector.load %arg13[%c0_7, %c0_8] : memref<8x128xbf16, #tpu.memory_space<vmem>>, vector<8x32xbf16>
    %c0_9 = arith.constant 0 : index
    %c0_10 = arith.constant 0 : index
    %10 = vector.load %arg11[%c0_9, %c0_10] : memref<8x128xbf16, #tpu.memory_space<vmem>>, vector<8x32xbf16>
    %c0_11 = arith.constant 0 : index
    %c0_12 = arith.constant 0 : index
    %11 = vector.load %arg12[%c0_11, %c0_12] : memref<8x128xbf16, #tpu.memory_space<vmem>>, vector<8x32xbf16>
    %cst_13 = arith.constant dense<0.000000e+00> : vector<8x8xf32>
    %12 = tpu.matmul %9, %10, %cst_13 {dimension_numbers = #tpu.dot_dimension_numbers<[1], [1], [0], [0], [0, 0, 1, 0], [], []>} : vector<8x32xbf16>, vector<8x32xbf16>, vector<8x8xf32> -> vector<8x8xf32>
    %cst_14 = arith.constant dense<0xFF800000> : vector<8xf32>
    %13 = vector.multi_reduction <maximumf>, %12, %cst_14 [1] : vector<8x8xf32> to vector<8xf32>
    %14 = vector.shape_cast %13 : vector<8xf32> to vector<8x1xf32>
    %15 = vector.broadcast %14 : vector<8x1xf32> to vector<8x8xf32>
    %16 = arith.subf %12, %15 : vector<8x8xf32>
    %17 = math.exp %16 : vector<8x8xf32>
    %cst_15 = arith.constant dense<0.000000e+00> : vector<8xf32>
    %18 = vector.multi_reduction <add>, %17, %cst_15 [1] : vector<8x8xf32> to vector<8xf32>
    %19 = vector.shape_cast %18 : vector<8xf32> to vector<8x1xf32>
    %20 = arith.truncf %17 : vector<8x8xf32> to vector<8x8xbf16>
    %cst_16 = arith.constant dense<0.000000e+00> : vector<8x32xf32>
    %21 = tpu.matmul %20, %11, %cst_16 {dimension_numbers = #tpu.dot_dimension_numbers<[1], [0], [0], [1], [0, 0, 1, 1], [], []>} : vector<8x8xbf16>, vector<8x32xbf16>, vector<8x32xf32> -> vector<8x32xf32>
    %22 = tpu.reciprocal %19 {approx = true} : vector<8x1xf32> -> vector<8x1xf32>
    %23 = vector.broadcast %22 : vector<8x1xf32> to vector<8x32xf32>
    %24 = arith.mulf %21, %23 : vector<8x32xf32>
    %25 = arith.truncf %24 : vector<8x32xf32> to vector<8x32xbf16>
    %c0_17 = arith.constant 0 : index
    %c0_18 = arith.constant 0 : index
    %26 = vector.load %arg14[%c0_17, %c0_18] : memref<8x128xbf16, #tpu.memory_space<vmem>>, vector<8x32xbf16>
    tpu.vector_store %arg14[%c0_17, %c0_18], %25 {strides = array<i32>} : memref<8x128xbf16, #tpu.memory_space<vmem>>, vector<8x32xbf16>,
    %c0_19 = arith.constant 0 : index
    %c32 = arith.constant 32 : index
    %27 = vector.load %arg13[%c0_19, %c32] : memref<8x128xbf16, #tpu.memory_space<vmem>>, vector<8x32xbf16>
    %c0_20 = arith.constant 0 : index
    %c32_21 = arith.constant 32 : index
    %28 = vector.load %arg11[%c0_20, %c32_21] : memref<8x128xbf16, #tpu.memory_space<vmem>>, vector<8x32xbf16>
    %c0_22 = arith.constant 0 : index
    %c32_23 = arith.constant 32 : index
    %29 = vector.load %arg12[%c0_22, %c32_23] : memref<8x128xbf16, #tpu.memory_space<vmem>>, vector<8x32xbf16>
    %cst_24 = arith.constant dense<0.000000e+00> : vector<8x8xf32>
    %30 = tpu.matmul %27, %28, %cst_24 {dimension_numbers = #tpu.dot_dimension_numbers<[1], [1], [0], [0], [0, 0, 1, 0], [], []>} : vector<8x32xbf16>, vector<8x32xbf16>, vector<8x8xf32> -> vector<8x8xf32>
    %cst_25 = arith.constant dense<0xFF800000> : vector<8xf32>
    %31 = vector.multi_reduction <maximumf>, %30, %cst_25 [1] : vector<8x8xf32> to vector<8xf32>
    %32 = vector.shape_cast %31 : vector<8xf32> to vector<8x1xf32>
    %33 = vector.broadcast %32 : vector<8x1xf32> to vector<8x8xf32>
    %34 = arith.subf %30, %33 : vector<8x8xf32>
    %35 = math.exp %34 : vector<8x8xf32>
    %cst_26 = arith.constant dense<0.000000e+00> : vector<8xf32>
    %36 = vector.multi_reduction <add>, %35, %cst_26 [1] : vector<8x8xf32> to vector<8xf32>
    %37 = vector.shape_cast %36 : vector<8xf32> to vector<8x1xf32>
    %38 = arith.truncf %35 : vector<8x8xf32> to vector<8x8xbf16>
    %cst_27 = arith.constant dense<0.000000e+00> : vector<8x32xf32>
    %39 = tpu.matmul %38, %29, %cst_27 {dimension_numbers = #tpu.dot_dimension_numbers<[1], [0], [0], [1], [0, 0, 1, 1], [], []>} : vector<8x8xbf16>, vector<8x32xbf16>, vector<8x32xf32> -> vector<8x32xf32>
    %40 = tpu.reciprocal %37 {approx = true} : vector<8x1xf32> -> vector<8x1xf32>
    %41 = vector.broadcast %40 : vector<8x1xf32> to vector<8x32xf32>
    %42 = arith.mulf %39, %41 : vector<8x32xf32>
    %43 = arith.truncf %42 : vector<8x32xf32> to vector<8x32xbf16>
    %c0_28 = arith.constant 0 : index
    %c32_29 = arith.constant 32 : index
    %44 = vector.load %arg14[%c0_28, %c32_29] : memref<8x128xbf16, #tpu.memory_space<vmem>>, vector<8x32xbf16>
    tpu.vector_store %arg14[%c0_28, %c32_29], %43 {strides = array<i32>} : memref<8x128xbf16, #tpu.memory_space<vmem>>, vector<8x32xbf16>,
    %c0_30 = arith.constant 0 : index
    %c64 = arith.constant 64 : index
    %45 = vector.load %arg13[%c0_30, %c64] : memref<8x128xbf16, #tpu.memory_space<vmem>>, vector<8x32xbf16>
    %c0_31 = arith.constant 0 : index
    %c64_32 = arith.constant 64 : index
    %46 = vector.load %arg11[%c0_31, %c64_32] : memref<8x128xbf16, #tpu.memory_space<vmem>>, vector<8x32xbf16>
    %c0_33 = arith.constant 0 : index
    %c64_34 = arith.constant 64 : index
    %47 = vector.load %arg12[%c0_33, %c64_34] : memref<8x128xbf16, #tpu.memory_space<vmem>>, vector<8x32xbf16>
    %cst_35 = arith.constant dense<0.000000e+00> : vector<8x8xf32>
    %48 = tpu.matmul %45, %46, %cst_35 {dimension_numbers = #tpu.dot_dimension_numbers<[1], [1], [0], [0], [0, 0, 1, 0], [], []>} : vector<8x32xbf16>, vector<8x32xbf16>, vector<8x8xf32> -> vector<8x8xf32>
    %cst_36 = arith.constant dense<0xFF800000> : vector<8xf32>
    %49 = vector.multi_reduction <maximumf>, %48, %cst_36 [1] : vector<8x8xf32> to vector<8xf32>
    %50 = vector.shape_cast %49 : vector<8xf32> to vector<8x1xf32>
    %51 = vector.broadcast %50 : vector<8x1xf32> to vector<8x8xf32>
    %52 = arith.subf %48, %51 : vector<8x8xf32>
    %53 = math.exp %52 : vector<8x8xf32>
    %cst_37 = arith.constant dense<0.000000e+00> : vector<8xf32>
    %54 = vector.multi_reduction <add>, %53, %cst_37 [1] : vector<8x8xf32> to vector<8xf32>
    %55 = vector.shape_cast %54 : vector<8xf32> to vector<8x1xf32>
    %56 = arith.truncf %53 : vector<8x8xf32> to vector<8x8xbf16>
    %cst_38 = arith.constant dense<0.000000e+00> : vector<8x32xf32>
    %57 = tpu.matmul %56, %47, %cst_38 {dimension_numbers = #tpu.dot_dimension_numbers<[1], [0], [0], [1], [0, 0, 1, 1], [], []>} : vector<8x8xbf16>, vector<8x32xbf16>, vector<8x32xf32> -> vector<8x32xf32>
    %58 = tpu.reciprocal %55 {approx = true} : vector<8x1xf32> -> vector<8x1xf32>
    %59 = vector.broadcast %58 : vector<8x1xf32> to vector<8x32xf32>
    %60 = arith.mulf %57, %59 : vector<8x32xf32>
    %61 = arith.truncf %60 : vector<8x32xf32> to vector<8x32xbf16>
    %c0_39 = arith.constant 0 : index
    %c64_40 = arith.constant 64 : index
    %62 = vector.load %arg14[%c0_39, %c64_40] : memref<8x128xbf16, #tpu.memory_space<vmem>>, vector<8x32xbf16>
    tpu.vector_store %arg14[%c0_39, %c64_40], %61 {strides = array<i32>} : memref<8x128xbf16, #tpu.memory_space<vmem>>, vector<8x32xbf16>,
    %c0_41 = arith.constant 0 : index
    %c96 = arith.constant 96 : index
    %63 = vector.load %arg13[%c0_41, %c96] : memref<8x128xbf16, #tpu.memory_space<vmem>>, vector<8x32xbf16>
    %c0_42 = arith.constant 0 : index
    %c96_43 = arith.constant 96 : index
    %64 = vector.load %arg11[%c0_42, %c96_43] : memref<8x128xbf16, #tpu.memory_space<vmem>>, vector<8x32xbf16>
    %c0_44 = arith.constant 0 : index
    %c96_45 = arith.constant 96 : index
    %65 = vector.load %arg12[%c0_44, %c96_45] : memref<8x128xbf16, #tpu.memory_space<vmem>>, vector<8x32xbf16>
    %cst_46 = arith.constant dense<0.000000e+00> : vector<8x8xf32>
    %66 = tpu.matmul %63, %64, %cst_46 {dimension_numbers = #tpu.dot_dimension_numbers<[1], [1], [0], [0], [0, 0, 1, 0], [], []>} : vector<8x32xbf16>, vector<8x32xbf16>, vector<8x8xf32> -> vector<8x8xf32>
    %cst_47 = arith.constant dense<0xFF800000> : vector<8xf32>
    %67 = vector.multi_reduction <maximumf>, %66, %cst_47 [1] : vector<8x8xf32> to vector<8xf32>
    %68 = vector.shape_cast %67 : vector<8xf32> to vector<8x1xf32>
    %69 = vector.broadcast %68 : vector<8x1xf32> to vector<8x8xf32>
    %70 = arith.subf %66, %69 : vector<8x8xf32>
    %71 = math.exp %70 : vector<8x8xf32>
    %cst_48 = arith.constant dense<0.000000e+00> : vector<8xf32>
    %72 = vector.multi_reduction <add>, %71, %cst_48 [1] : vector<8x8xf32> to vector<8xf32>
    %73 = vector.shape_cast %72 : vector<8xf32> to vector<8x1xf32>
    %74 = arith.truncf %71 : vector<8x8xf32> to vector<8x8xbf16>
    %cst_49 = arith.constant dense<0.000000e+00> : vector<8x32xf32>
    %75 = tpu.matmul %74, %65, %cst_49 {dimension_numbers = #tpu.dot_dimension_numbers<[1], [0], [0], [1], [0, 0, 1, 1], [], []>} : vector<8x8xbf16>, vector<8x32xbf16>, vector<8x32xf32> -> vector<8x32xf32>
    %76 = tpu.reciprocal %73 {approx = true} : vector<8x1xf32> -> vector<8x1xf32>
    %77 = vector.broadcast %76 : vector<8x1xf32> to vector<8x32xf32>
    %78 = arith.mulf %75, %77 : vector<8x32xf32>
    %79 = arith.truncf %78 : vector<8x32xf32> to vector<8x32xbf16>
    %c0_50 = arith.constant 0 : index
    %c96_51 = arith.constant 96 : index
    %80 = vector.load %arg14[%c0_50, %c96_51] : memref<8x128xbf16, #tpu.memory_space<vmem>>, vector<8x32xbf16>
    tpu.vector_store %arg14[%c0_50, %c96_51], %79 {strides = array<i32>} : memref<8x128xbf16, #tpu.memory_space<vmem>>, vector<8x32xbf16>,
    %c0_52 = arith.constant 0 : index
    %c0_53 = arith.constant 0 : index
    %81 = vector.load %arg14[%c0_52, %c0_53] : memref<8x128xbf16, #tpu.memory_space<vmem>>, vector<8x128xbf16>
    %c0_54 = arith.constant 0 : index
    %c0_55 = arith.constant 0 : index
    %82 = vector.load %arg8[%c0_54, %c0_55] : memref<128x32xbf16, #tpu.memory_space<vmem>>, vector<128x32xbf16>
    %cst_56 = arith.constant dense<0.000000e+00> : vector<8x32xf32>
    %83 = tpu.matmul %81, %82, %cst_56 {dimension_numbers = #tpu.dot_dimension_numbers<[1], [0], [0], [1], [0, 0, 1, 1], [], []>} : vector<8x128xbf16>, vector<128x32xbf16>, vector<8x32xf32> -> vector<8x32xf32>
    %c0_57 = arith.constant 0 : index
    %c0_58 = arith.constant 0 : index
    %84 = vector.load %arg9[%c0_57, %c0_58] : memref<1x32xf32, #tpu.memory_space<vmem>>, vector<1x32xf32>
    %85 = vector.broadcast %84 : vector<1x32xf32> to vector<8x32xf32>
    %86 = arith.addf %83, %85 : vector<8x32xf32>
    %c0_59 = arith.constant 0 : index
    %c0_60 = arith.constant 0 : index
    %c0_61 = arith.constant 0 : index
    %87 = vector.load %arg10[%c0_59, %c0_60, %c0_61] : memref<1x8x32xf32, #tpu.memory_space<vmem>>, vector<1x8x32xf32>
    %88 = vector.shape_cast %87 : vector<1x8x32xf32> to vector<8x32xf32>
    %89 = vector.shape_cast %86 : vector<8x32xf32> to vector<1x8x32xf32>
    tpu.vector_store %arg10[%c0_59, %c0_60, %c0_61], %89 {strides = array<i32>} : memref<1x8x32xf32, #tpu.memory_space<vmem>>, vector<1x8x32xf32>,
    return
  }
  func.func @transform_0(%arg0: i32, %arg1: i32) -> (i32, i32, i32) {
    %c0_i32 = arith.constant 0 : i32
    %c0_i32_0 = arith.constant 0 : i32
    %c0_i32_1 = arith.constant 0 : i32
    return %arg0, %c0_i32, %c0_i32_0 : i32, i32, i32
  }
  func.func @transform_1(%arg0: i32, %arg1: i32) -> (i32, i32, i32) {
    %c0_i32 = arith.constant 0 : i32
    %c0_i32_0 = arith.constant 0 : i32
    return %arg0, %arg1, %c0_i32 : i32, i32, i32
  }
  func.func @transform_2(%arg0: i32, %arg1: i32) -> (i32, i32, i32) {
    %c0_i32 = arith.constant 0 : i32
    %c0_i32_0 = arith.constant 0 : i32
    %c0_i32_1 = arith.constant 0 : i32
    return %arg0, %c0_i32, %c0_i32_0 : i32, i32, i32
  }
  func.func @transform_3(%arg0: i32, %arg1: i32) -> (i32, i32) {
    %c0_i32 = arith.constant 0 : i32
    %c0_i32_0 = arith.constant 0 : i32
    %c0_i32_1 = arith.constant 0 : i32
    return %c0_i32, %c0_i32_0 : i32, i32
  }
  func.func @transform_4(%arg0: i32, %arg1: i32) -> (i32, i32) {
    %c0_i32 = arith.constant 0 : i32
    %c0_i32_0 = arith.constant 0 : i32
    %c0_i32_1 = arith.constant 0 : i32
    return %c0_i32, %c0_i32_0 : i32, i32
  }
  func.func @transform_5(%arg0: i32, %arg1: i32) -> (i32, i32) {
    %c0_i32 = arith.constant 0 : i32
    %c0_i32_0 = arith.constant 0 : i32
    %c0_i32_1 = arith.constant 0 : i32
    return %c0_i32, %c0_i32_0 : i32, i32
  }
  func.func @transform_6(%arg0: i32, %arg1: i32) -> (i32, i32) {
    %c0_i32 = arith.constant 0 : i32
    %c0_i32_0 = arith.constant 0 : i32
    %c0_i32_1 = arith.constant 0 : i32
    return %c0_i32, %c0_i32_0 : i32, i32
  }
  func.func @transform_7(%arg0: i32, %arg1: i32) -> (i32, i32) {
    %c0_i32 = arith.constant 0 : i32
    %c0_i32_0 = arith.constant 0 : i32
    %c0_i32_1 = arith.constant 0 : i32
    return %c0_i32, %c0_i32_0 : i32, i32
  }
  func.func @transform_8(%arg0: i32, %arg1: i32) -> (i32, i32, i32) {
    %c0_i32 = arith.constant 0 : i32
    %c0_i32_0 = arith.constant 0 : i32
    return %arg0, %arg1, %c0_i32 : i32, i32, i32
  }
}

</mosaic_0001>

<llo_original>
// kernel: tpu_custom_call.1
$region0: #{tpu_custom_call.1}
  #allocation0 [shape = 'u32[]', space=smem, size = 0x4, offset = 0x4, fixed_abs, tag = 'smem constant byte address 0x4 - core index']
  #allocation1 [shape = 'u32[72,128]{1,0:T(1,128)}', space=vmem, size = 0x9000, scoped, tag = 'internal scratch']
  #allocation2 [shape = 'bf16[8,128]{1,0:T(8,128)(2,1)}', space=vmem, size = 0x800, scoped, tag = 'scratch operand']
  #allocation3 [shape = 'bf16[8,128]{1,0:T(8,128)(2,1)}', space=vmem, size = 0x800, scoped, tag = 'scratch operand']
  #allocation4 [shape = 'bf16[8,128]{1,0:T(8,128)(2,1)}', space=vmem, size = 0x800, scoped, tag = 'scratch operand']
  #allocation5 [shape = 'bf16[8,128]{1,0:T(8,128)(2,1)}', space=vmem, size = 0x800, scoped, tag = 'scratch operand']
  %s0 = inlined_call_operand.vmem [shape: bf16[2,8,32], index: 0, kind: input, shape index: {}]
  %s1 = inlined_call_operand.vmem [shape: bf16[2,8,32], index: 1, kind: input, shape index: {}]
  %s2 = inlined_call_operand.vmem [shape: bf16[2,8,32], index: 2, kind: input, shape index: {}]
  %s3 = inlined_call_operand.vmem [shape: bf16[32,128], index: 3, kind: input, shape index: {}]
  %s4 = inlined_call_operand.vmem [shape: bf16[32,128], index: 4, kind: input, shape index: {}]
  %s5 = inlined_call_operand.vmem [shape: bf16[32,128], index: 5, kind: input, shape index: {}]
  %s6 = inlined_call_operand.vmem [shape: bf16[128,32], index: 6, kind: input, shape index: {}]
  %s7 = inlined_call_operand.vmem [shape: f32[1,32], index: 7, kind: input, shape index: {}]
  %s8 = inlined_call_operand.hbm [shape: f32[2,8,32], index: 8, kind: output, shape index: {}]
  %s9 = sld [smem:[#allocation0]]
  $region69: #{tpu_custom_call.1} parent=0
    _
  %s11 = ssub.s32 1, %s9
  %s12 = scalar_select 0, %s11, %s9
  $region1: #{tpu_custom_call.1} parent=0
    #allocation6 [shape = 'u8[8192]{0}', space=vmem, size = 0x2000, scoped, tag = 'output window, operand 0']
    #allocation7 [shape = 's32[2]{0}', space=sflag, size = 0x8, scoped, tag = 'scoped memory for tpu_custom_call.1']
    %13 = vsyncpa [#allocation7], 0
    %s14 = scalar_lea.sflag [#allocation7], 1
    %15 = vsyncpa %s14, 0
    loop: start=0, step=1, limit=4
    $region2: #{tpu_custom_call.1} parent=1 // loop_pre_header
      _
    $region3: #{tpu_custom_call.1} parent=1 // loop_header
      %s17 = sphi 0, %s21
      %p18 = scmp.ge.s32.totalorder %s17, 4
      %s24 = sphi 0, %s36
      %s25 = sphi 0, %s32
      %s26 = sphi 0, %s24
      %s27 = sphi 0, %s25
      %s28 = sphi 0, %s26
      %s29 = sphi 0, %s27
      %s39 = sphi 0, %s41
      %s42 = sphi 0, %s39
      %s43 = sphi 0, %s42
      %s59 = sphi 0, %s43
      %s67 = sphi 0, %s69
      %s70 = sphi 0, %s67
      %s71 = sphi 0, %s70
      %s87 = sphi 0, %s71
      %s93 = sphi 0, %s95
      %s96 = sphi 0, %s93
      %s97 = sphi 0, %s96
      %s113 = sphi 0, %s97
      %s117 = sphi 0, %s117
      %s119 = sphi 0, %s117
      %s120 = sphi 0, %s119
      %s134 = sphi 0, %s120
      %s138 = sphi 0, %s138
      %s140 = sphi 0, %s138
      %s141 = sphi 0, %s140
      %s155 = sphi 0, %s141
      %s159 = sphi 0, %s159
      %s161 = sphi 0, %s159
      %s162 = sphi 0, %s161
      %s176 = sphi 0, %s162
      %s180 = sphi 0, %s180
      %s182 = sphi 0, %s180
      %s183 = sphi 0, %s182
      %s197 = sphi 0, %s183
      %s201 = sphi 0, %s201
      %s203 = sphi 0, %s201
      %s204 = sphi 0, %s203
      %s218 = sphi 0, %s204
      %s226 = sphi 0, %s228
      %s229 = sphi 0, %s226
      %s230 = sphi 0, %s229
      %s246 = sphi 0, %s230
    $region4: #{tpu_custom_call.1} parent=1 // loop_header_branch
      %20 = sbr.rel (%p18) target = $region8
    $region5: #{tpu_custom_call.1} parent=1 // loop_body
      %s22 = ssub.s32 %s17, 1
      %s23 = ssub.s32 %s17, 2
      %s30 = sadd.s32 1, %s25
      %p31 = scmp.ge.s32.totalorder %s30, 1
      %s32 = scalar_select %p31, 0, %s30
      %s33 = sadd.s32 1, %s24
      %s34 = scalar_select %p31, %s33, %s24
      %p35 = scmp.ge.s32.totalorder %s34, 2
      %s36 = scalar_select %p35, 0, %s34
      %s37 = ssub.s32 %s24, %s36
      %p38 = scmp.eq.s32.totalorder %s37, 0
      %s40 = sadd.s32 %s39, 1
      %s41 = scalar_select %p38, %s39, %s40
      %p44 = pneg %p38
      %p45 = scmp.eq.s32.totalorder %s17, 1
      %p46 = por %p44, %p45
      %p47 = scmp.ne.s32.totalorder %s39, %s42
      %p48 = scmp.eq.s32.totalorder %s17, 0
      %p49 = por %p47, %p48
      %p50 = scmp.ne.s32.totalorder %s39, %s42
      %p51 = scmp.eq.s32.totalorder %s22, 1
      %p52 = por %p50, %p51
      %p53 = scmp.ne.s32.totalorder %s42, %s43
      %p54 = scmp.eq.s32.totalorder %s22, 0
      %p55 = por %p53, %p54
      %p56 = scmp.ne.s32.totalorder %s42, %s43
      %p57 = scmp.eq.s32.totalorder %s23, 1
      %p58 = por %p56, %p57
      %p60 = scmp.ne.s32.totalorder %s43, %s59
      %p61 = scmp.eq.s32.totalorder %s23, 0
      %p62 = por %p60, %p61
      %s63 = ssub.s32 %s24, %s36
      %s64 = ssub.s32 %s25, %s32
      %s65 = sor.u32 %s63, %s64
      %p66 = scmp.eq.s32.totalorder %s65, 0
      %s68 = sadd.s32 %s67, 1
      %s69 = scalar_select %p66, %s67, %s68
      %p72 = pneg %p66
      %p73 = scmp.eq.s32.totalorder %s17, 1
      %p74 = por %p72, %p73
      %p75 = scmp.ne.s32.totalorder %s67, %s70
      %p76 = scmp.eq.s32.totalorder %s17, 0
      %p77 = por %p75, %p76
      %p78 = scmp.ne.s32.totalorder %s67, %s70
      %p79 = scmp.eq.s32.totalorder %s22, 1
      %p80 = por %p78, %p79
      %p81 = scmp.ne.s32.totalorder %s70, %s71
      %p82 = scmp.eq.s32.totalorder %s22, 0
      %p83 = por %p81, %p82
      %p84 = scmp.ne.s32.totalorder %s70, %s71
      %p85 = scmp.eq.s32.totalorder %s23, 1
      %p86 = por %p84, %p85
      %p88 = scmp.ne.s32.totalorder %s71, %s87
      %p89 = scmp.eq.s32.totalorder %s23, 0
      %p90 = por %p88, %p89
      %s91 = ssub.s32 %s24, %s36
      %p92 = scmp.eq.s32.totalorder %s91, 0
      %s94 = sadd.s32 %s93, 1
      %s95 = scalar_select %p92, %s93, %s94
      %p98 = pneg %p92
      %p99 = scmp.eq.s32.totalorder %s17, 1
      %p100 = por %p98, %p99
      %p101 = scmp.ne.s32.totalorder %s93, %s96
      %p102 = scmp.eq.s32.totalorder %s17, 0
      %p103 = por %p101, %p102
      %p104 = scmp.ne.s32.totalorder %s93, %s96
      %p105 = scmp.eq.s32.totalorder %s22, 1
      %p106 = por %p104, %p105
      %p107 = scmp.ne.s32.totalorder %s96, %s97
      %p108 = scmp.eq.s32.totalorder %s22, 0
      %p109 = por %p107, %p108
      %p110 = scmp.ne.s32.totalorder %s96, %s97
      %p111 = scmp.eq.s32.totalorder %s23, 1
      %p112 = por %p110, %p111
      %p114 = scmp.ne.s32.totalorder %s97, %s113
      %p115 = scmp.eq.s32.totalorder %s23, 0
      %p116 = por %p114, %p115
      %s118 = sadd.s32 %s117, 1
      %p121 = scmp.eq.s32.totalorder %s17, 1
      %p122 = scmp.ne.s32.totalorder %s117, %s119
      %p123 = scmp.eq.s32.totalorder %s17, 0
      %p124 = por %p122, %p123
      %p125 = scmp.ne.s32.totalorder %s117, %s119
      %p126 = scmp.eq.s32.totalorder %s22, 1
      %p127 = por %p125, %p126
      %p128 = scmp.ne.s32.totalorder %s119, %s120
      %p129 = scmp.eq.s32.totalorder %s22, 0
      %p130 = por %p128, %p129
      %p131 = scmp.ne.s32.totalorder %s119, %s120
      %p132 = scmp.eq.s32.totalorder %s23, 1
      %p133 = por %p131, %p132
      %p135 = scmp.ne.s32.totalorder %s120, %s134
      %p136 = scmp.eq.s32.totalorder %s23, 0
      %p137 = por %p135, %p136
      %s139 = sadd.s32 %s138, 1
      %p142 = scmp.eq.s32.totalorder %s17, 1
      %p143 = scmp.ne.s32.totalorder %s138, %s140
      %p144 = scmp.eq.s32.totalorder %s17, 0
      %p145 = por %p143, %p144
      %p146 = scmp.ne.s32.totalorder %s138, %s140
      %p147 = scmp.eq.s32.totalorder %s22, 1
      %p148 = por %p146, %p147
      %p149 = scmp.ne.s32.totalorder %s140, %s141
      %p150 = scmp.eq.s32.totalorder %s22, 0
      %p151 = por %p149, %p150
      %p152 = scmp.ne.s32.totalorder %s140, %s141
      %p153 = scmp.eq.s32.totalorder %s23, 1
      %p154 = por %p152, %p153
      %p156 = scmp.ne.s32.totalorder %s141, %s155
      %p157 = scmp.eq.s32.totalorder %s23, 0
      %p158 = por %p156, %p157
      %s160 = sadd.s32 %s159, 1
      %p163 = scmp.eq.s32.totalorder %s17, 1
      %p164 = scmp.ne.s32.totalorder %s159, %s161
      %p165 = scmp.eq.s32.totalorder %s17, 0
      %p166 = por %p164, %p165
      %p167 = scmp.ne.s32.totalorder %s159, %s161
      %p168 = scmp.eq.s32.totalorder %s22, 1
      %p169 = por %p167, %p168
      %p170 = scmp.ne.s32.totalorder %s161, %s162
      %p171 = scmp.eq.s32.totalorder %s22, 0
      %p172 = por %p170, %p171
      %p173 = scmp.ne.s32.totalorder %s161, %s162
      %p174 = scmp.eq.s32.totalorder %s23, 1
      %p175 = por %p173, %p174
      %p177 = scmp.ne.s32.totalorder %s162, %s176
      %p178 = scmp.eq.s32.totalorder %s23, 0
      %p179 = por %p177, %p178
      %s181 = sadd.s32 %s180, 1
      %p184 = scmp.eq.s32.totalorder %s17, 1
      %p185 = scmp.ne.s32.totalorder %s180, %s182
      %p186 = scmp.eq.s32.totalorder %s17, 0
      %p187 = por %p185, %p186
      %p188 = scmp.ne.s32.totalorder %s180, %s182
      %p189 = scmp.eq.s32.totalorder %s22, 1
      %p190 = por %p188, %p189
      %p191 = scmp.ne.s32.totalorder %s182, %s183
      %p192 = scmp.eq.s32.totalorder %s22, 0
      %p193 = por %p191, %p192
      %p194 = scmp.ne.s32.totalorder %s182, %s183
      %p195 = scmp.eq.s32.totalorder %s23, 1
      %p196 = por %p194, %p195
      %p198 = scmp.ne.s32.totalorder %s183, %s197
      %p199 = scmp.eq.s32.totalorder %s23, 0
      %p200 = por %p198, %p199
      %s202 = sadd.s32 %s201, 1
      %p205 = scmp.eq.s32.totalorder %s17, 1
      %p206 = scmp.ne.s32.totalorder %s201, %s203
      %p207 = scmp.eq.s32.totalorder %s17, 0
      %p208 = por %p206, %p207
      %p209 = scmp.ne.s32.totalorder %s201, %s203
      %p210 = scmp.eq.s32.totalorder %s22, 1
      %p211 = por %p209, %p210
      %p212 = scmp.ne.s32.totalorder %s203, %s204
      %p213 = scmp.eq.s32.totalorder %s22, 0
      %p214 = por %p212, %p213
      %p215 = scmp.ne.s32.totalorder %s203, %s204
      %p216 = scmp.eq.s32.totalorder %s23, 1
      %p217 = por %p215, %p216
      %p219 = scmp.ne.s32.totalorder %s204, %s218
      %p220 = scmp.eq.s32.totalorder %s23, 0
      %p221 = por %p219, %p220
      %s222 = ssub.s32 %s24, %s36
      %s223 = ssub.s32 %s25, %s32
      %s224 = sor.u32 %s222, %s223
      %p225 = scmp.eq.s32.totalorder %s224, 0
      %s227 = sadd.s32 %s226, 1
      %s228 = scalar_select %p225, %s226, %s227
      %p231 = pneg %p225
      %p232 = scmp.eq.s32.totalorder %s17, 1
      %p233 = por %p231, %p232
      %p234 = scmp.ne.s32.totalorder %s226, %s229
      %p235 = scmp.eq.s32.totalorder %s17, 0
      %p236 = por %p234, %p235
      %p237 = scmp.ne.s32.totalorder %s226, %s229
      %p238 = scmp.eq.s32.totalorder %s22, 1
      %p239 = por %p237, %p238
      %p240 = scmp.ne.s32.totalorder %s229, %s230
      %p241 = scmp.eq.s32.totalorder %s22, 0
      %p242 = por %p240, %p241
      %p243 = scmp.ne.s32.totalorder %s229, %s230
      %p244 = scmp.eq.s32.totalorder %s23, 1
      %p245 = por %p243, %p244
      %p247 = scmp.ne.s32.totalorder %s230, %s246
      %p248 = scmp.eq.s32.totalorder %s23, 0
      %p249 = por %p247, %p248
      %p250 = scmp.le.s32.totalorder 1, %s17
      %p251 = scmp.lt.s32.totalorder %s17, 3
      %p252 = pnand %p250, %p251
      %p253 = pneg %p252
      // Predicated region
      $region9: #{tpu_custom_call.1} parent=5 // pred_check
        _
      $region10: #{tpu_custom_call.1} parent=5 // pred_check_branch
        %255 = sbr.rel (%p252) target = $region12
      $region11: #{tpu_custom_call.1} parent=5 // pred_region
        %s256 = ssub.s32 %s17, 1
        // Predicated region
        $region13: #{tpu_custom_call.1} parent=11 // pred_check
          %p257 = pneg %p130
        $region14: #{tpu_custom_call.1} parent=11 // pred_check_branch
          %259 = sbr.rel (%p257) target = $region16
        $region15: #{tpu_custom_call.1} parent=11 // pred_region
          _
        $region16: #{tpu_custom_call.1} parent=11 // pred_fallthru
          _
        // Predicated region
        $region17: #{tpu_custom_call.1} parent=11 // pred_check
          %p260 = pneg %p151
        $region18: #{tpu_custom_call.1} parent=11 // pred_check_branch
          %262 = sbr.rel (%p260) target = $region20
        $region19: #{tpu_custom_call.1} parent=11 // pred_region
          _
        $region20: #{tpu_custom_call.1} parent=11 // pred_fallthru
          _
        // Predicated region
        $region21: #{tpu_custom_call.1} parent=11 // pred_check
          %p263 = pneg %p172
        $region22: #{tpu_custom_call.1} parent=11 // pred_check_branch
          %265 = sbr.rel (%p263) target = $region24
        $region23: #{tpu_custom_call.1} parent=11 // pred_region
          _
        $region24: #{tpu_custom_call.1} parent=11 // pred_fallthru
          _
        // Predicated region
        $region25: #{tpu_custom_call.1} parent=11 // pred_check
          %p266 = pneg %p193
        $region26: #{tpu_custom_call.1} parent=11 // pred_check_branch
          %268 = sbr.rel (%p266) target = $region28
        $region27: #{tpu_custom_call.1} parent=11 // pred_region
          _
        $region28: #{tpu_custom_call.1} parent=11 // pred_fallthru
          _
        // Predicated region
        $region29: #{tpu_custom_call.1} parent=11 // pred_check
          %p269 = pneg %p214
        $region30: #{tpu_custom_call.1} parent=11 // pred_check_branch
          %271 = sbr.rel (%p269) target = $region32
        $region31: #{tpu_custom_call.1} parent=11 // pred_region
          _
        $region32: #{tpu_custom_call.1} parent=11 // pred_fallthru
          _
      $region12: #{tpu_custom_call.1} parent=5 // pred_fallthru
        _
      %p272 = scmp.lt.s32.totalorder %s17, 2
      // Predicated region
      $region33: #{tpu_custom_call.1} parent=5 // pred_check
        %p273 = pneg %p272
      $region34: #{tpu_custom_call.1} parent=5 // pred_check_branch
        %275 = sbr.rel (%p273) target = $region36
      $region35: #{tpu_custom_call.1} parent=5 // pred_region
        // Predicated region
        $region37: #{tpu_custom_call.1} parent=35 // pred_check
          %p276 = pneg %p49
        $region38: #{tpu_custom_call.1} parent=35 // pred_check_branch
          %278 = sbr.rel (%p276) target = $region40
        $region39: #{tpu_custom_call.1} parent=35 // pred_region
          %p279 = scmp.lt.s32.totalorder %s24, 1
          %s280 = scalar_select %p279, %s24, 1
          %s281 = smul.addr %s280, 4
          %s282 = scalar_lea.vmem %s0, %s281
        $region40: #{tpu_custom_call.1} parent=35 // pred_fallthru
          _
        // Predicated region
        $region41: #{tpu_custom_call.1} parent=35 // pred_check
          %p283 = pneg %p77
        $region42: #{tpu_custom_call.1} parent=35 // pred_check_branch
          %285 = sbr.rel (%p283) target = $region44
        $region43: #{tpu_custom_call.1} parent=35 // pred_region
          %p286 = scmp.lt.s32.totalorder %s24, 1
          %s287 = scalar_select %p286, %s24, 1
          %p288 = scmp.lt.s32.totalorder %s25, 0
          %s289 = scalar_select %p288, %s25, 0
          %s290 = sadd.s32 %s289, %s287
          %s291 = smul.addr %s290, 4
          %s292 = scalar_lea.vmem %s1, %s291
        $region44: #{tpu_custom_call.1} parent=35 // pred_fallthru
          _
        // Predicated region
        $region45: #{tpu_custom_call.1} parent=35 // pred_check
          %p293 = pneg %p103
        $region46: #{tpu_custom_call.1} parent=35 // pred_check_branch
          %295 = sbr.rel (%p293) target = $region48
        $region47: #{tpu_custom_call.1} parent=35 // pred_region
          %p296 = scmp.lt.s32.totalorder %s24, 1
          %s297 = scalar_select %p296, %s24, 1
          %s298 = smul.addr %s297, 4
          %s299 = scalar_lea.vmem %s2, %s298
        $region48: #{tpu_custom_call.1} parent=35 // pred_fallthru
          _
      $region36: #{tpu_custom_call.1} parent=5 // pred_fallthru
        _
      %p300 = scmp.le.s32.totalorder 1, %s17
      %p301 = scmp.lt.s32.totalorder %s17, 3
      %p302 = pnand %p300, %p301
      %p303 = pneg %p302
      // Predicated region
      $region49: #{tpu_custom_call.1} parent=5 // pred_check
        _
      $region50: #{tpu_custom_call.1} parent=5 // pred_check_branch
        %305 = sbr.rel (%p302) target = $region52
      $region51: #{tpu_custom_call.1} parent=5 // pred_region
        %s306 = ssub.s32 %s17, 1
        %p307 = scmp.lt.s32.totalorder %s26, 1
        %s308 = scalar_select %p307, %s26, 1
        %s309 = smul.addr %s308, 4
        %s310 = scalar_lea.vmem %s0, %s309
        %p311 = pneg %p55
        %p312 = pneg %p52
        %p313 = scmp.lt.s32.totalorder %s26, 1
        %s314 = scalar_select %p313, %s26, 1
        %p315 = scmp.lt.s32.totalorder %s27, 0
        %s316 = scalar_select %p315, %s27, 0
        %s317 = sadd.s32 %s316, %s314
        %s318 = smul.addr %s317, 4
        %s319 = scalar_lea.vmem %s1, %s318
        %p320 = pneg %p83
        %p321 = pneg %p80
        %p322 = scmp.lt.s32.totalorder %s26, 1
        %s323 = scalar_select %p322, %s26, 1
        %s324 = smul.addr %s323, 4
        %s325 = scalar_lea.vmem %s2, %s324
        %p326 = pneg %p109
        %p327 = pneg %p106
        %p328 = pneg %p130
        %p329 = pneg %p127
        %p330 = pneg %p151
        %p331 = pneg %p148
        %p332 = pneg %p172
        %p333 = pneg %p169
        %p334 = pneg %p193
        %p335 = pneg %p190
        %p336 = pneg %p214
        %p337 = pneg %p211
        %p338 = pneg %p242
        %p339 = pneg %p239
        %s340 = sand.u32 %s229, 1
        %s341 = scalar_lea.sflag [#allocation7], %s340
        %s342 = sand.u32 %s229, 1
        %s343 = smul.addr %s342, 8
        %s344 = scalar_lea.vmem [#allocation6], %s343
        %p345 = scmp.lt.s32.totalorder %s26, 1
        %s346 = scalar_select %p345, %s26, 1
        %s347 = smul.addr %s346, 4
        %s348 = scalar_lea.vmem %s0, %s347
        %p349 = scmp.lt.s32.totalorder %s26, 1
        %s350 = scalar_select %p349, %s26, 1
        %p351 = scmp.lt.s32.totalorder %s27, 0
        %s352 = scalar_select %p351, %s27, 0
        %s353 = sadd.s32 %s352, %s350
        %s354 = smul.addr %s353, 4
        %s355 = scalar_lea.vmem %s1, %s354
        %p356 = scmp.lt.s32.totalorder %s26, 1
        %s357 = scalar_select %p356, %s26, 1
        %s358 = smul.addr %s357, 4
        %s359 = scalar_lea.vmem %s2, %s358
        %p361 = scmp.eq.s32.totalorder %s27, 0
        // Predicated region
        $region53: #{tpu_custom_call.1} parent=51 // pred_check
          %p362 = pneg %p361
        $region54: #{tpu_custom_call.1} parent=51 // pred_check_branch
          %364 = sbr.rel (%p362) target = $region56
        $region55: #{tpu_custom_call.1} parent=51 // pred_region
          %v365 = vld [vmem:[%s348] sm:$0xf]
          %v366 = vld [vmem:[%s3] sm:$0xf]
          %v367 = vld [vmem:[%s3 + $0x4] sm:$0xf]
          %v368 = vld [vmem:[%s3 + $0x8] sm:$0xf]
          %v369 = vld [vmem:[%s3 + $0xc] sm:$0xf]
          %v374 = vunpack.c.l.b16 %v366
          %v375 = vunpack.c.l.b16 %v367
          %v376 = vunpack.c.l.b16 %v368
          %v377 = vunpack.c.l.b16 %v369
          %v378 = vpack.c.b16 %v375, %v374
          %v379 = vpack.c.b16 %v377, %v376
          %vm382 = vcmask 261120
          %v384 = vsel %vm382, %v365, 0
          %386 = vmatpush.bf16.msra.mxu0 0
          %387 = vmatpush.bf16.msra.mxu0 0
          %388 = vmatpush.bf16.msra.mxu0 0
          %389 = vmatpush.bf16.msra.mxu0 0
          %390 = vmatpush.bf16.msra.mxu0 0
          %391 = vmatpush.bf16.msra.mxu0 0
          %392 = vmatpush.bf16.msra.mxu0 %v379
          %393 = vmatpush.bf16.msra.mxu0 %v378
          %394 = vmatmul.bf16.gmra.mxu0 %v384
          %v395 = vpop.f32.mrf.mxu0
          %v396 = vadd.f32 0.0, %v395
          %v397 = vpop.f32.mrf.mxu0
          %398 = vdwg.mxu0
          %v399 = vpack.c.bf16 %v396, %v396
          %400 = vst [vmem:[#allocation2] sm:$0xf] %v399
          %v401 = vld [vmem:[%s359] sm:$0xf]
          %v402 = vld [vmem:[%s5] sm:$0xf]
          %v403 = vld [vmem:[%s5 + $0x4] sm:$0xf]
          %v404 = vld [vmem:[%s5 + $0x8] sm:$0xf]
          %v405 = vld [vmem:[%s5 + $0xc] sm:$0xf]
          %v410 = vunpack.c.l.b16 %v402
          %v411 = vunpack.c.l.b16 %v403
          %v412 = vunpack.c.l.b16 %v404
          %v413 = vunpack.c.l.b16 %v405
          %v414 = vpack.c.b16 %v411, %v410
          %v415 = vpack.c.b16 %v413, %v412
          %v419 = vsel %vm382, %v401, 0
          %421 = vmatpush.bf16.msra.mxu0 0
          %422 = vmatpush.bf16.msra.mxu0 0
          %423 = vmatpush.bf16.msra.mxu0 0
          %424 = vmatpush.bf16.msra.mxu0 0
          %425 = vmatpush.bf16.msra.mxu0 0
          %426 = vmatpush.bf16.msra.mxu0 0
          %427 = vmatpush.bf16.msra.mxu0 %v415
          %428 = vmatpush.bf16.msra.mxu0 %v414
          %429 = vmatmul.bf16.gmra.mxu0 %v419
          %v430 = vpop.f32.mrf.mxu0
          %v431 = vadd.f32 0.0, %v430
          %v432 = vpop.f32.mrf.mxu0
          %433 = vdwg.mxu0
          %v434 = vpack.c.bf16 %v431, %v431
          %435 = vst [vmem:[#allocation3] sm:$0xf] %v434
        $region56: #{tpu_custom_call.1} parent=51 // pred_fallthru
          _
        %v436 = vld [vmem:[%s355] sm:$0xf]
        %v437 = vld [vmem:[%s4] sm:$0xf]
        %v438 = vld [vmem:[%s4 + $0x4] sm:$0xf]
        %v439 = vld [vmem:[%s4 + $0x8] sm:$0xf]
        %v440 = vld [vmem:[%s4 + $0xc] sm:$0xf]
        %v445 = vunpack.c.l.b16 %v437
        %v446 = vunpack.c.l.b16 %v438
        %v447 = vunpack.c.l.b16 %v439
        %v448 = vunpack.c.l.b16 %v440
        %v449 = vpack.c.b16 %v446, %v445
        %v450 = vpack.c.b16 %v448, %v447
        %vm453 = vcmask 261120
        %v455 = vsel %vm453, %v436, 0
        %457 = vmatpush.bf16.msra.mxu0 0
        %458 = vmatpush.bf16.msra.mxu0 0
        %459 = vmatpush.bf16.msra.mxu0 0
        %460 = vmatpush.bf16.msra.mxu0 0
        %461 = vmatpush.bf16.msra.mxu0 0
        %462 = vmatpush.bf16.msra.mxu0 0
        %463 = vmatpush.bf16.msra.mxu0 %v450
        %464 = vmatpush.bf16.msra.mxu0 %v449
        %465 = vmatmul.bf16.gmra.mxu0 %v455
        %v466 = vpop.f32.mrf.mxu0
        %v467 = vadd.f32 0.0, %v466
        %v468 = vpop.f32.mrf.mxu0
        %469 = vdwg.mxu0
        %v470 = vpack.c.bf16 %v467, %v467
        %471 = vst [vmem:[#allocation4] sm:$0xf] %v470
        %v472 = vld [vmem:[#allocation4] sm:$0xf]
        %v473 = vld [vmem:[#allocation2] sm:$0xf]
        %v474 = vld [vmem:[#allocation3] sm:$0xf]
        %v476 = vsel %vm453, %v472, 0
        %v479 = vsel %vm453, %v473, 0
        %481 = vmatpush.bf16.xpose.msra.mxu0 0
        %482 = vmatpush.bf16.xpose.msra.mxu0 0
        %483 = vmatpush.bf16.xpose.msra.mxu0 0
        %484 = vmatpush.bf16.xpose.msra.mxu0 0
        %485 = vmatpush.bf16.xpose.msra.mxu0 0
        %486 = vmatpush.bf16.xpose.msra.mxu0 0
        %487 = vmatpush.bf16.xpose.msra.mxu0 0
        %488 = vmatpush.bf16.xpose.msra.mxu0 %v479
        %489 = vmatmul.bf16.gmra.mxu0 %v476
        %v490 = vpop.f32.mrf.mxu0
        %v491 = vadd.f32 0.0, %v490
        %v492 = vpop.f32.mrf.mxu0
        %493 = vdwg.mxu0
        %vm494 = vcmask 64512
        %v495 = vsel %vm494, %v491, -inf
        %496 = vmax.xlane.f32.xlu0 %v495
        %v497 = vpop.xlane.xlu0 %496
        %v498 = vsub.f32 %v491, %v497
        %v499 = vmul.f32 %v498, 1.442695
        %v500 = vpow.pop %v499
        %v501 = vsel %vm494, %v500, 0.0
        %502 = vadd.xlane.f32.xlu0 %v501
        %v503 = vpop.xlane.xlu0 %502
        %v504 = vpack.c.bf16 %v500, %v500
        %v506 = vsel %vm494, %v504, 0
        %vm508 = vcmask 1043456
        %v510 = vsel %vm508, %v474, 0
        %512 = vmatpush.bf16.msra.mxu0 0
        %513 = vmatpush.bf16.msra.mxu0 0
        %514 = vmatpush.bf16.msra.mxu0 0
        %515 = vmatpush.bf16.msra.mxu0 0
        %516 = vmatpush.bf16.msra.mxu0 0
        %517 = vmatpush.bf16.msra.mxu0 0
        %518 = vmatpush.bf16.msra.mxu0 0
        %519 = vmatpush.bf16.msra.mxu0 %v510
        %520 = vmatmul.bf16.gmra.mxu0 %v506
        %v521 = vpop.f32.mrf.mxu0
        %v522 = vadd.f32 0.0, %v521
        %v523 = vpop.f32.mrf.mxu0
        %524 = vdwg.mxu0
        %v525 = vrcp.pop %v503
        %v526 = vmul.f32 %v522, %v525
        %v527 = vpack.c.bf16 %v526, %v526
        %vm528 = vcmask 257024
        %529 = vst.msk [vmem:[#allocation5] sm:$0xf] %vm528, %v527
        %v530 = vld [vmem:[#allocation4] sm:$0xf]
        %v531 = vld [vmem:[#allocation2] sm:$0xf]
        %v532 = vld [vmem:[#allocation3] sm:$0xf]
        %v534 = vunpack.c.l.b16 %v530
        %v535 = vpack.c.b16 %v534, %v534
        %536 = vrot.lane.b32.xlu0 %v535, 96
        %v537 = vpop.permute.xlu0 %536
        %v539 = vunpack.c.l.b16 %v531
        %v540 = vpack.c.b16 %v539, %v539
        %541 = vrot.lane.b32.xlu0 %v540, 96
        %v542 = vpop.permute.xlu0 %541
        %v544 = vsel %vm453, %v537, 0
        %v547 = vsel %vm453, %v542, 0
        %549 = vmatpush.bf16.xpose.msra.mxu0 0
        %550 = vmatpush.bf16.xpose.msra.mxu0 0
        %551 = vmatpush.bf16.xpose.msra.mxu0 0
        %552 = vmatpush.bf16.xpose.msra.mxu0 0
        %553 = vmatpush.bf16.xpose.msra.mxu0 0
        %554 = vmatpush.bf16.xpose.msra.mxu0 0
        %555 = vmatpush.bf16.xpose.msra.mxu0 0
        %556 = vmatpush.bf16.xpose.msra.mxu0 %v547
        %557 = vmatmul.bf16.gmra.mxu0 %v544
        %v558 = vpop.f32.mrf.mxu0
        %v559 = vadd.f32 0.0, %v558
        %v560 = vpop.f32.mrf.mxu0
        %561 = vdwg.mxu0
        %v562 = vsel %vm494, %v559, -inf
        %563 = vmax.xlane.f32.xlu0 %v562
        %v564 = vpop.xlane.xlu0 %563
        %v565 = vsub.f32 %v559, %v564
        %v566 = vmul.f32 %v565, 1.442695
        %v567 = vpow.pop %v566
        %v568 = vsel %vm494, %v567, 0.0
        %569 = vadd.xlane.f32.xlu0 %v568
        %v570 = vpop.xlane.xlu0 %569
        %v571 = vpack.c.bf16 %v567, %v567
        %v573 = vunpack.c.l.b16 %v532
        %v574 = vpack.c.b16 %v573, %v573
        %575 = vrot.lane.b32.xlu0 %v574, 96
        %v576 = vpop.permute.xlu0 %575
        %v578 = vsel %vm494, %v571, 0
        %v581 = vsel %vm508, %v576, 0
        %583 = vmatpush.bf16.msra.mxu0 0
        %584 = vmatpush.bf16.msra.mxu0 0
        %585 = vmatpush.bf16.msra.mxu0 0
        %586 = vmatpush.bf16.msra.mxu0 0
        %587 = vmatpush.bf16.msra.mxu0 0
        %588 = vmatpush.bf16.msra.mxu0 0
        %589 = vmatpush.bf16.msra.mxu0 0
        %590 = vmatpush.bf16.msra.mxu0 %v581
        %591 = vmatmul.bf16.gmra.mxu0 %v578
        %v592 = vpop.f32.mrf.mxu0
        %v593 = vadd.f32 0.0, %v592
        %v594 = vpop.f32.mrf.mxu0
        %595 = vdwg.mxu0
        %v596 = vrcp.pop %v570
        %v597 = vmul.f32 %v593, %v596
        %v598 = vpack.c.bf16 %v597, %v597
        %600 = vrot.lane.b32.xlu0 %v598, 32
        %v601 = vpop.permute.xlu0 %600
        %vm603 = vcmask 519424
        %604 = vst.msk [vmem:[#allocation5] sm:$0xf] %vm603, %v601
        %v605 = vld [vmem:[#allocation4] sm:$0xf]
        %v606 = vld [vmem:[#allocation2] sm:$0xf]
        %v607 = vld [vmem:[#allocation3] sm:$0xf]
        %v609 = vunpack.c.l.b16 %v605
        %v610 = vpack.c.b16 %v609, %v609
        %611 = vrot.lane.b32.xlu0 %v610, 64
        %v612 = vpop.permute.xlu0 %611
        %v614 = vunpack.c.l.b16 %v606
        %v615 = vpack.c.b16 %v614, %v614
        %616 = vrot.lane.b32.xlu0 %v615, 64
        %v617 = vpop.permute.xlu0 %616
        %v619 = vsel %vm453, %v612, 0
        %v622 = vsel %vm453, %v617, 0
        %624 = vmatpush.bf16.xpose.msra.mxu0 0
        %625 = vmatpush.bf16.xpose.msra.mxu0 0
        %626 = vmatpush.bf16.xpose.msra.mxu0 0
        %627 = vmatpush.bf16.xpose.msra.mxu0 0
        %628 = vmatpush.bf16.xpose.msra.mxu0 0
        %629 = vmatpush.bf16.xpose.msra.mxu0 0
        %630 = vmatpush.bf16.xpose.msra.mxu0 0
        %631 = vmatpush.bf16.xpose.msra.mxu0 %v622
        %632 = vmatmul.bf16.gmra.mxu0 %v619
        %v633 = vpop.f32.mrf.mxu0
        %v634 = vadd.f32 0.0, %v633
        %v635 = vpop.f32.mrf.mxu0
        %636 = vdwg.mxu0
        %v637 = vsel %vm494, %v634, -inf
        %638 = vmax.xlane.f32.xlu0 %v637
        %v639 = vpop.xlane.xlu0 %638
        %v640 = vsub.f32 %v634, %v639
        %v641 = vmul.f32 %v640, 1.442695
        %v642 = vpow.pop %v641
        %v643 = vsel %vm494, %v642, 0.0
        %644 = vadd.xlane.f32.xlu0 %v643
        %v645 = vpop.xlane.xlu0 %644
        %v646 = vpack.c.bf16 %v642, %v642
        %v648 = vunpack.c.l.b16 %v607
        %v649 = vpack.c.b16 %v648, %v648
        %650 = vrot.lane.b32.xlu0 %v649, 64
        %v651 = vpop.permute.xlu0 %650
        %v653 = vsel %vm494, %v646, 0
        %v656 = vsel %vm508, %v651, 0
        %658 = vmatpush.bf16.msra.mxu0 0
        %659 = vmatpush.bf16.msra.mxu0 0
        %660 = vmatpush.bf16.msra.mxu0 0
        %661 = vmatpush.bf16.msra.mxu0 0
        %662 = vmatpush.bf16.msra.mxu0 0
        %663 = vmatpush.bf16.msra.mxu0 0
        %664 = vmatpush.bf16.msra.mxu0 0
        %665 = vmatpush.bf16.msra.mxu0 %v656
        %666 = vmatmul.bf16.gmra.mxu0 %v653
        %v667 = vpop.f32.mrf.mxu0
        %v668 = vadd.f32 0.0, %v667
        %v669 = vpop.f32.mrf.mxu0
        %670 = vdwg.mxu0
        %v671 = vrcp.pop %v645
        %v672 = vmul.f32 %v668, %v671
        %v673 = vpack.c.bf16 %v672, %v672
        %675 = vrot.lane.b32.xlu0 %v673, 64
        %v676 = vpop.permute.xlu0 %675
        %vm678 = vcmask 781824
        %679 = vst.msk [vmem:[#allocation5] sm:$0xf] %vm678, %v676
        %v680 = vld [vmem:[#allocation4] sm:$0xf]
        %v681 = vld [vmem:[#allocation2] sm:$0xf]
        %v682 = vld [vmem:[#allocation3] sm:$0xf]
        %v684 = vunpack.c.l.b16 %v680
        %v685 = vpack.c.b16 %v684, %v684
        %686 = vrot.lane.b32.xlu0 %v685, 32
        %v687 = vpop.permute.xlu0 %686
        %v689 = vunpack.c.l.b16 %v681
        %v690 = vpack.c.b16 %v689, %v689
        %691 = vrot.lane.b32.xlu0 %v690, 32
        %v692 = vpop.permute.xlu0 %691
        %v694 = vsel %vm453, %v687, 0
        %v697 = vsel %vm453, %v692, 0
        %699 = vmatpush.bf16.xpose.msra.mxu0 0
        %700 = vmatpush.bf16.xpose.msra.mxu0 0
        %701 = vmatpush.bf16.xpose.msra.mxu0 0
        %702 = vmatpush.bf16.xpose.msra.mxu0 0
        %703 = vmatpush.bf16.xpose.msra.mxu0 0
        %704 = vmatpush.bf16.xpose.msra.mxu0 0
        %705 = vmatpush.bf16.xpose.msra.mxu0 0
        %706 = vmatpush.bf16.xpose.msra.mxu0 %v697
        %707 = vmatmul.bf16.gmra.mxu0 %v694
        %v708 = vpop.f32.mrf.mxu0
        %v709 = vadd.f32 0.0, %v708
        %v710 = vpop.f32.mrf.mxu0
        %711 = vdwg.mxu0
        %v712 = vsel %vm494, %v709, -inf
        %713 = vmax.xlane.f32.xlu0 %v712
        %v714 = vpop.xlane.xlu0 %713
        %v715 = vsub.f32 %v709, %v714
        %v716 = vmul.f32 %v715, 1.442695
        %v717 = vpow.pop %v716
        %v718 = vsel %vm494, %v717, 0.0
        %719 = vadd.xlane.f32.xlu0 %v718
        %v720 = vpop.xlane.xlu0 %719
        %v721 = vpack.c.bf16 %v717, %v717
        %v723 = vunpack.c.l.b16 %v682
        %v724 = vpack.c.b16 %v723, %v723
        %725 = vrot.lane.b32.xlu0 %v724, 32
        %v726 = vpop.permute.xlu0 %725
        %v728 = vsel %vm494, %v721, 0
        %v731 = vsel %vm508, %v726, 0
        %733 = vmatpush.bf16.msra.mxu0 0
        %734 = vmatpush.bf16.msra.mxu0 0
        %735 = vmatpush.bf16.msra.mxu0 0
        %736 = vmatpush.bf16.msra.mxu0 0
        %737 = vmatpush.bf16.msra.mxu0 0
        %738 = vmatpush.bf16.msra.mxu0 0
        %739 = vmatpush.bf16.msra.mxu0 0
        %740 = vmatpush.bf16.msra.mxu0 %v731
        %741 = vmatmul.bf16.gmra.mxu0 %v728
        %v742 = vpop.f32.mrf.mxu0
        %v743 = vadd.f32 0.0, %v742
        %v744 = vpop.f32.mrf.mxu0
        %745 = vdwg.mxu0
        %v746 = vrcp.pop %v720
        %v747 = vmul.f32 %v743, %v746
        %v748 = vpack.c.bf16 %v747, %v747
        %750 = vrot.lane.b32.xlu0 %v748, 96
        %v751 = vpop.permute.xlu0 %750
        %vm753 = vcmask 1044224
        %754 = vst.msk [vmem:[#allocation5] sm:$0xf] %vm753, %v751
        %v755 = vld [vmem:[#allocation5] sm:$0xf]
        %v756 = vld [vmem:[%s6] sm:$0xf]
        %v757 = vld [vmem:[%s6 + $0x4] sm:$0xf]
        %v758 = vld [vmem:[%s6 + $0x8] sm:$0xf]
        %v759 = vld [vmem:[%s6 + $0xc] sm:$0xf]
        %v760 = vld [vmem:[%s6 + $0x10] sm:$0xf]
        %v761 = vld [vmem:[%s6 + $0x14] sm:$0xf]
        %v762 = vld [vmem:[%s6 + $0x18] sm:$0xf]
        %v763 = vld [vmem:[%s6 + $0x1c] sm:$0xf]
        %v764 = vld [vmem:[%s6 + $0x20] sm:$0xf]
        %v765 = vld [vmem:[%s6 + $0x24] sm:$0xf]
        %v766 = vld [vmem:[%s6 + $0x28] sm:$0xf]
        %v767 = vld [vmem:[%s6 + $0x2c] sm:$0xf]
        %v768 = vld [vmem:[%s6 + $0x30] sm:$0xf]
        %v769 = vld [vmem:[%s6 + $0x34] sm:$0xf]
        %v770 = vld [vmem:[%s6 + $0x38] sm:$0xf]
        %v771 = vld [vmem:[%s6 + $0x3c] sm:$0xf]
        %v772 = vld [vmem:[%s7] sm:$0x1]
        %v774 = vperm.slane %v772, 0
        %v792 = vunpack.c.l.b16 %v756
        %v793 = vunpack.c.l.b16 %v757
        %v794 = vunpack.c.l.b16 %v758
        %v795 = vunpack.c.l.b16 %v759
        %v796 = vunpack.c.l.b16 %v760
        %v797 = vunpack.c.l.b16 %v761
        %v798 = vunpack.c.l.b16 %v762
        %v799 = vunpack.c.l.b16 %v763
        %v800 = vunpack.c.l.b16 %v764
        %v801 = vunpack.c.l.b16 %v765
        %v802 = vunpack.c.l.b16 %v766
        %v803 = vunpack.c.l.b16 %v767
        %v804 = vunpack.c.l.b16 %v768
        %v805 = vunpack.c.l.b16 %v769
        %v806 = vunpack.c.l.b16 %v770
        %v807 = vunpack.c.l.b16 %v771
        %v808 = vpack.c.b16 %v793, %v792
        %v809 = vpack.c.b16 %v795, %v794
        %v810 = vpack.c.b16 %v797, %v796
        %v811 = vpack.c.b16 %v799, %v798
        %v812 = vpack.c.b16 %v801, %v800
        %v813 = vpack.c.b16 %v803, %v802
        %v814 = vpack.c.b16 %v805, %v804
        %v815 = vpack.c.b16 %v807, %v806
        %824 = vmatpush.bf16.msra.mxu0 %v815
        %825 = vmatpush.bf16.msra.mxu0 %v814
        %826 = vmatpush.bf16.msra.mxu0 %v813
        %827 = vmatpush.bf16.msra.mxu0 %v812
        %828 = vmatpush.bf16.msra.mxu0 %v811
        %829 = vmatpush.bf16.msra.mxu0 %v810
        %830 = vmatpush.bf16.msra.mxu0 %v809
        %831 = vmatpush.bf16.msra.mxu0 %v808
        %832 = vmatmul.bf16.gmra.mxu0 %v755
        %v833 = vpop.f32.mrf.mxu0
        %v834 = vadd.f32 %v774, %v833
        %v835 = vpop.f32.mrf.mxu0
        %836 = vdwg.mxu0
        %837 = vst.msk [vmem:[%s344] sm:$0xff] %vm453, %v834
        %s838 = sand.u32 %s229, 1
        %s839 = scalar_lea.sflag [#allocation7], %s838
        %s840 = sand.u32 %s229, 1
        %s841 = smul.addr %s840, 8
        %s842 = scalar_lea.vmem [#allocation6], %s841
        // Predicated region
        $region57: #{tpu_custom_call.1} parent=51 // pred_check
          %p843 = pneg %p239
        $region58: #{tpu_custom_call.1} parent=51 // pred_check_branch
          %845 = sbr.rel (%p843) target = $region60
        $region59: #{tpu_custom_call.1} parent=51 // pred_region
          %847 = vsyncadd %s839, 0
          %s848 = sadd.s32 %s27, %s26
          %s849 = smul.addr %s848, 8
          %s850 = scalar_lea.hbm %s8, %s849
          %s852 = sshll.u32 %s842, 4
          %s853 = int_to_ptr.vmem [resolvable:$true] %s852
          %s854 = sshll.u32 %s850, 4
          %s855 = int_to_ptr.hbm [resolvable:$true] %s854
          %857 = dma.vmem_to_hbm [thread:$0]  %s853, 128, %s855, %s839
        $region60: #{tpu_custom_call.1} parent=51 // pred_fallthru
          _
      $region52: #{tpu_custom_call.1} parent=5 // pred_fallthru
        _
      %p858 = scmp.le.s32.totalorder 2, %s17
      // Predicated region
      $region61: #{tpu_custom_call.1} parent=5 // pred_check
        %p859 = pneg %p858
      $region62: #{tpu_custom_call.1} parent=5 // pred_check_branch
        %861 = sbr.rel (%p859) target = $region64
      $region63: #{tpu_custom_call.1} parent=5 // pred_region
        %s862 = ssub.s32 %s17, 2
        // Predicated region
        $region65: #{tpu_custom_call.1} parent=63 // pred_check
          %p863 = pneg %p245
        $region66: #{tpu_custom_call.1} parent=63 // pred_check_branch
          %865 = sbr.rel (%p863) target = $region68
        $region67: #{tpu_custom_call.1} parent=63 // pred_region
          %s866 = sand.u32 %s230, 1
          %s867 = scalar_lea.sflag [#allocation7], %s866
          %s868 = sand.u32 %s230, 1
          %s869 = smul.addr %s868, 8
          %s870 = scalar_lea.vmem [#allocation6], %s869
          %872 = dma.done %s867, 128
        $region68: #{tpu_custom_call.1} parent=63 // pred_fallthru
          _
      $region64: #{tpu_custom_call.1} parent=5 // pred_fallthru
        _
    $region6: #{tpu_custom_call.1} parent=1 // loop_footer
      %s21 = sadd.s32 1, %s17
    $region7: #{tpu_custom_call.1} parent=1 // loop_footer_branch
      %16 = sbr.rel target = $region3
    $region8: #{tpu_custom_call.1} parent=1 // loop_exit
      _
    %873 = vsyncpa [#allocation7], 1
    %s874 = scalar_lea.sflag [#allocation7], 1
    %875 = vsyncpa %s874, 1

// kernel: tpu_custom_call.1
$region0: #{tpu_custom_call.1}
  #allocation0 [shape = 'u32[]', space=smem, size = 0x4, offset = 0x4, fixed_abs, tag = 'smem constant byte address 0x4 - core index']
  #allocation1 [shape = 'u32[72,128]{1,0:T(1,128)}', space=vmem, size = 0x9000, scoped, tag = 'internal scratch']
  #allocation2 [shape = 'bf16[8,128]{1,0:T(8,128)(2,1)}', space=vmem, size = 0x800, scoped, tag = 'scratch operand']
  #allocation3 [shape = 'bf16[8,128]{1,0:T(8,128)(2,1)}', space=vmem, size = 0x800, scoped, tag = 'scratch operand']
  #allocation4 [shape = 'bf16[8,128]{1,0:T(8,128)(2,1)}', space=vmem, size = 0x800, scoped, tag = 'scratch operand']
  #allocation5 [shape = 'bf16[8,128]{1,0:T(8,128)(2,1)}', space=vmem, size = 0x800, scoped, tag = 'scratch operand']
  %s0 = inlined_call_operand.vmem [shape: bf16[2,8,32], index: 0, kind: input, shape index: {}]
  %s1 = inlined_call_operand.vmem [shape: bf16[2,8,32], index: 1, kind: input, shape index: {}]
  %s2 = inlined_call_operand.vmem [shape: bf16[2,8,32], index: 2, kind: input, shape index: {}]
  %s3 = inlined_call_operand.vmem [shape: bf16[32,128], index: 3, kind: input, shape index: {}]
  %s4 = inlined_call_operand.vmem [shape: bf16[32,128], index: 4, kind: input, shape index: {}]
  %s5 = inlined_call_operand.vmem [shape: bf16[32,128], index: 5, kind: input, shape index: {}]
  %s6 = inlined_call_operand.vmem [shape: bf16[128,32], index: 6, kind: input, shape index: {}]
  %s7 = inlined_call_operand.vmem [shape: f32[1,32], index: 7, kind: input, shape index: {}]
  %s8 = inlined_call_operand.hbm [shape: f32[2,8,32], index: 8, kind: output, shape index: {}]
  %s9 = sld [smem:[#allocation0]]
  $region69: #{tpu_custom_call.1} parent=0
    _
  %s11 = ssub.s32 1, %s9
  %s12 = scalar_select 0, %s11, %s9
  $region1: #{tpu_custom_call.1} parent=0
    #allocation6 [shape = 'u8[8192]{0}', space=vmem, size = 0x2000, scoped, tag = 'output window, operand 0']
    #allocation7 [shape = 's32[2]{0}', space=sflag, size = 0x8, scoped, tag = 'scoped memory for tpu_custom_call.1']
    %13 = vsyncpa [#allocation7], 0
    %s14 = scalar_lea.sflag [#allocation7], 1
    %15 = vsyncpa %s14, 0
    loop: start=0, step=1, limit=4
    $region2: #{tpu_custom_call.1} parent=1 // loop_pre_header
      _
    $region3: #{tpu_custom_call.1} parent=1 // loop_header
      %s17 = sphi 0, %s21
      %p18 = scmp.ge.s32.totalorder %s17, 4
      %s24 = sphi 0, %s36
      %s25 = sphi 0, %s32
      %s26 = sphi 0, %s24
      %s27 = sphi 0, %s25
      %s28 = sphi 0, %s26
      %s29 = sphi 0, %s27
      %s39 = sphi 0, %s41
      %s42 = sphi 0, %s39
      %s43 = sphi 0, %s42
      %s59 = sphi 0, %s43
      %s67 = sphi 0, %s69
      %s70 = sphi 0, %s67
      %s71 = sphi 0, %s70
      %s87 = sphi 0, %s71
      %s93 = sphi 0, %s95
      %s96 = sphi 0, %s93
      %s97 = sphi 0, %s96
      %s113 = sphi 0, %s97
      %s117 = sphi 0, %s117
      %s119 = sphi 0, %s117
      %s120 = sphi 0, %s119
      %s134 = sphi 0, %s120
      %s138 = sphi 0, %s138
      %s140 = sphi 0, %s138
      %s141 = sphi 0, %s140
      %s155 = sphi 0, %s141
      %s159 = sphi 0, %s159
      %s161 = sphi 0, %s159
      %s162 = sphi 0, %s161
      %s176 = sphi 0, %s162
      %s180 = sphi 0, %s180
      %s182 = sphi 0, %s180
      %s183 = sphi 0, %s182
      %s197 = sphi 0, %s183
      %s201 = sphi 0, %s201
      %s203 = sphi 0, %s201
      %s204 = sphi 0, %s203
      %s218 = sphi 0, %s204
      %s226 = sphi 0, %s228
      %s229 = sphi 0, %s226
      %s230 = sphi 0, %s229
      %s246 = sphi 0, %s230
    $region4: #{tpu_custom_call.1} parent=1 // loop_header_branch
      %20 = sbr.rel (%p18) target = $region8
    $region5: #{tpu_custom_call.1} parent=1 // loop_body
      %s22 = ssub.s32 %s17, 1
      %s23 = ssub.s32 %s17, 2
      %s30 = sadd.s32 1, %s25
      %p31 = scmp.ge.s32.totalorder %s30, 1
      %s32 = scalar_select %p31, 0, %s30
      %s33 = sadd.s32 1, %s24
      %s34 = scalar_select %p31, %s33, %s24
      %p35 = scmp.ge.s32.totalorder %s34, 2
      %s36 = scalar_select %p35, 0, %s34
      %s37 = ssub.s32 %s24, %s36
      %p38 = scmp.eq.s32.totalorder %s37, 0
      %s40 = sadd.s32 %s39, 1
      %s41 = scalar_select %p38, %s39, %s40
      %p44 = pneg %p38
      %p45 = scmp.eq.s32.totalorder %s17, 1
      %p46 = por %p44, %p45
      %p47 = scmp.ne.s32.totalorder %s39, %s42
      %p48 = scmp.eq.s32.totalorder %s17, 0
      %p49 = por %p47, %p48
      %p50 = scmp.ne.s32.totalorder %s39, %s42
      %p51 = scmp.eq.s32.totalorder %s22, 1
      %p52 = por %p50, %p51
      %p53 = scmp.ne.s32.totalorder %s42, %s43
      %p54 = scmp.eq.s32.totalorder %s22, 0
      %p55 = por %p53, %p54
      %p56 = scmp.ne.s32.totalorder %s42, %s43
      %p57 = scmp.eq.s32.totalorder %s23, 1
      %p58 = por %p56, %p57
      %p60 = scmp.ne.s32.totalorder %s43, %s59
      %p61 = scmp.eq.s32.totalorder %s23, 0
      %p62 = por %p60, %p61
      %s63 = ssub.s32 %s24, %s36
      %s64 = ssub.s32 %s25, %s32
      %s65 = sor.u32 %s63, %s64
      %p66 = scmp.eq.s32.totalorder %s65, 0
      %s68 = sadd.s32 %s67, 1
      %s69 = scalar_select %p66, %s67, %s68
      %p72 = pneg %p66
      %p73 = scmp.eq.s32.totalorder %s17, 1
      %p74 = por %p72, %p73
      %p75 = scmp.ne.s32.totalorder %s67, %s70
      %p76 = scmp.eq.s32.totalorder %s17, 0
      %p77 = por %p75, %p76
      %p78 = scmp.ne.s32.totalorder %s67, %s70
      %p79 = scmp.eq.s32.totalorder %s22, 1
      %p80 = por %p78, %p79
      %p81 = scmp.ne.s32.totalorder %s70, %s71
      %p82 = scmp.eq.s32.totalorder %s22, 0
      %p83 = por %p81, %p82
      %p84 = scmp.ne.s32.totalorder %s70, %s71
      %p85 = scmp.eq.s32.totalorder %s23, 1
      %p86 = por %p84, %p85
      %p88 = scmp.ne.s32.totalorder %s71, %s87
      %p89 = scmp.eq.s32.totalorder %s23, 0
      %p90 = por %p88, %p89
      %s91 = ssub.s32 %s24, %s36
      %p92 = scmp.eq.s32.totalorder %s91, 0
      %s94 = sadd.s32 %s93, 1
      %s95 = scalar_select %p92, %s93, %s94
      %p98 = pneg %p92
      %p99 = scmp.eq.s32.totalorder %s17, 1
      %p100 = por %p98, %p99
      %p101 = scmp.ne.s32.totalorder %s93, %s96
      %p102 = scmp.eq.s32.totalorder %s17, 0
      %p103 = por %p101, %p102
      %p104 = scmp.ne.s32.totalorder %s93, %s96
      %p105 = scmp.eq.s32.totalorder %s22, 1
      %p106 = por %p104, %p105
      %p107 = scmp.ne.s32.totalorder %s96, %s97
      %p108 = scmp.eq.s32.totalorder %s22, 0
      %p109 = por %p107, %p108
      %p110 = scmp.ne.s32.totalorder %s96, %s97
      %p111 = scmp.eq.s32.totalorder %s23, 1
      %p112 = por %p110, %p111
      %p114 = scmp.ne.s32.totalorder %s97, %s113
      %p115 = scmp.eq.s32.totalorder %s23, 0
      %p116 = por %p114, %p115
      %s118 = sadd.s32 %s117, 1
      %p121 = scmp.eq.s32.totalorder %s17, 1
      %p122 = scmp.ne.s32.totalorder %s117, %s119
      %p123 = scmp.eq.s32.totalorder %s17, 0
      %p124 = por %p122, %p123
      %p125 = scmp.ne.s32.totalorder %s117, %s119
      %p126 = scmp.eq.s32.totalorder %s22, 1
      %p127 = por %p125, %p126
      %p128 = scmp.ne.s32.totalorder %s119, %s120
      %p129 = scmp.eq.s32.totalorder %s22, 0
      %p130 = por %p128, %p129
      %p131 = scmp.ne.s32.totalorder %s119, %s120
      %p132 = scmp.eq.s32.totalorder %s23, 1
      %p133 = por %p131, %p132
      %p135 = scmp.ne.s32.totalorder %s120, %s134
      %p136 = scmp.eq.s32.totalorder %s23, 0
      %p137 = por %p135, %p136
      %s139 = sadd.s32 %s138, 1
      %p142 = scmp.eq.s32.totalorder %s17, 1
      %p143 = scmp.ne.s32.totalorder %s138, %s140
      %p144 = scmp.eq.s32.totalorder %s17, 0
      %p145 = por %p143, %p144
      %p146 = scmp.ne.s32.totalorder %s138, %s140
      %p147 = scmp.eq.s32.totalorder %s22, 1
      %p148 = por %p146, %p147
      %p149 = scmp.ne.s32.totalorder %s140, %s141
      %p150 = scmp.eq.s32.totalorder %s22, 0
      %p151 = por %p149, %p150
      %p152 = scmp.ne.s32.totalorder %s140, %s141
      %p153 = scmp.eq.s32.totalorder %s23, 1
      %p154 = por %p152, %p153
      %p156 = scmp.ne.s32.totalorder %s141, %s155
      %p157 = scmp.eq.s32.totalorder %s23, 0
      %p158 = por %p156, %p157
      %s160 = sadd.s32 %s159, 1
      %p163 = scmp.eq.s32.totalorder %s17, 1
      %p164 = scmp.ne.s32.totalorder %s159, %s161
      %p165 = scmp.eq.s32.totalorder %s17, 0
      %p166 = por %p164, %p165
      %p167 = scmp.ne.s32.totalorder %s159, %s161
      %p168 = scmp.eq.s32.totalorder %s22, 1
      %p169 = por %p167, %p168
      %p170 = scmp.ne.s32.totalorder %s161, %s162
      %p171 = scmp.eq.s32.totalorder %s22, 0
      %p172 = por %p170, %p171
      %p173 = scmp.ne.s32.totalorder %s161, %s162
      %p174 = scmp.eq.s32.totalorder %s23, 1
      %p175 = por %p173, %p174
      %p177 = scmp.ne.s32.totalorder %s162, %s176
      %p178 = scmp.eq.s32.totalorder %s23, 0
      %p179 = por %p177, %p178
      %s181 = sadd.s32 %s180, 1
      %p184 = scmp.eq.s32.totalorder %s17, 1
      %p185 = scmp.ne.s32.totalorder %s180, %s182
      %p186 = scmp.eq.s32.totalorder %s17, 0
      %p187 = por %p185, %p186
      %p188 = scmp.ne.s32.totalorder %s180, %s182
      %p189 = scmp.eq.s32.totalorder %s22, 1
      %p190 = por %p188, %p189
      %p191 = scmp.ne.s32.totalorder %s182, %s183
      %p192 = scmp.eq.s32.totalorder %s22, 0
      %p193 = por %p191, %p192
      %p194 = scmp.ne.s32.totalorder %s182, %s183
      %p195 = scmp.eq.s32.totalorder %s23, 1
      %p196 = por %p194, %p195
      %p198 = scmp.ne.s32.totalorder %s183, %s197
      %p199 = scmp.eq.s32.totalorder %s23, 0
      %p200 = por %p198, %p199
      %s202 = sadd.s32 %s201, 1
      %p205 = scmp.eq.s32.totalorder %s17, 1
      %p206 = scmp.ne.s32.totalorder %s201, %s203
      %p207 = scmp.eq.s32.totalorder %s17, 0
      %p208 = por %p206, %p207
      %p209 = scmp.ne.s32.totalorder %s201, %s203
      %p210 = scmp.eq.s32.totalorder %s22, 1
      %p211 = por %p209, %p210
      %p212 = scmp.ne.s32.totalorder %s203, %s204
      %p213 = scmp.eq.s32.totalorder %s22, 0
      %p214 = por %p212, %p213
      %p215 = scmp.ne.s32.totalorder %s203, %s204
      %p216 = scmp.eq.s32.totalorder %s23, 1
      %p217 = por %p215, %p216
      %p219 = scmp.ne.s32.totalorder %s204, %s218
      %p220 = scmp.eq.s32.totalorder %s23, 0
      %p221 = por %p219, %p220
      %s222 = ssub.s32 %s24, %s36
      %s223 = ssub.s32 %s25, %s32
      %s224 = sor.u32 %s222, %s223
      %p225 = scmp.eq.s32.totalorder %s224, 0
      %s227 = sadd.s32 %s226, 1
      %s228 = scalar_select %p225, %s226, %s227
      %p231 = pneg %p225
      %p232 = scmp.eq.s32.totalorder %s17, 1
      %p233 = por %p231, %p232
      %p234 = scmp.ne.s32.totalorder %s226, %s229
      %p235 = scmp.eq.s32.totalorder %s17, 0
      %p236 = por %p234, %p235
      %p237 = scmp.ne.s32.totalorder %s226, %s229
      %p238 = scmp.eq.s32.totalorder %s22, 1
      %p239 = por %p237, %p238
      %p240 = scmp.ne.s32.totalorder %s229, %s230
      %p241 = scmp.eq.s32.totalorder %s22, 0
      %p242 = por %p240, %p241
      %p243 = scmp.ne.s32.totalorder %s229, %s230
      %p244 = scmp.eq.s32.totalorder %s23, 1
      %p245 = por %p243, %p244
      %p247 = scmp.ne.s32.totalorder %s230, %s246
      %p248 = scmp.eq.s32.totalorder %s23, 0
      %p249 = por %p247, %p248
      %p250 = scmp.le.s32.totalorder 1, %s17
      %p251 = scmp.lt.s32.totalorder %s17, 3
      %p252 = pnand %p250, %p251
      %p253 = pneg %p252
      // Predicated region
      $region9: #{tpu_custom_call.1} parent=5 // pred_check
        _
      $region10: #{tpu_custom_call.1} parent=5 // pred_check_branch
        %255 = sbr.rel (%p252) target = $region12
      $region11: #{tpu_custom_call.1} parent=5 // pred_region
        %s256 = ssub.s32 %s17, 1
        // Predicated region
        $region13: #{tpu_custom_call.1} parent=11 // pred_check
          %p257 = pneg %p130
        $region14: #{tpu_custom_call.1} parent=11 // pred_check_branch
          %259 = sbr.rel (%p257) target = $region16
        $region15: #{tpu_custom_call.1} parent=11 // pred_region
          _
        $region16: #{tpu_custom_call.1} parent=11 // pred_fallthru
          _
        // Predicated region
        $region17: #{tpu_custom_call.1} parent=11 // pred_check
          %p260 = pneg %p151
        $region18: #{tpu_custom_call.1} parent=11 // pred_check_branch
          %262 = sbr.rel (%p260) target = $region20
        $region19: #{tpu_custom_call.1} parent=11 // pred_region
          _
        $region20: #{tpu_custom_call.1} parent=11 // pred_fallthru
          _
        // Predicated region
        $region21: #{tpu_custom_call.1} parent=11 // pred_check
          %p263 = pneg %p172
        $region22: #{tpu_custom_call.1} parent=11 // pred_check_branch
          %265 = sbr.rel (%p263) target = $region24
        $region23: #{tpu_custom_call.1} parent=11 // pred_region
          _
        $region24: #{tpu_custom_call.1} parent=11 // pred_fallthru
          _
        // Predicated region
        $region25: #{tpu_custom_call.1} parent=11 // pred_check
          %p266 = pneg %p193
        $region26: #{tpu_custom_call.1} parent=11 // pred_check_branch
          %268 = sbr.rel (%p266) target = $region28
        $region27: #{tpu_custom_call.1} parent=11 // pred_region
          _
        $region28: #{tpu_custom_call.1} parent=11 // pred_fallthru
          _
        // Predicated region
        $region29: #{tpu_custom_call.1} parent=11 // pred_check
          %p269 = pneg %p214
        $region30: #{tpu_custom_call.1} parent=11 // pred_check_branch
          %271 = sbr.rel (%p269) target = $region32
        $region31: #{tpu_custom_call.1} parent=11 // pred_region
          _
        $region32: #{tpu_custom_call.1} parent=11 // pred_fallthru
          _
      $region12: #{tpu_custom_call.1} parent=5 // pred_fallthru
        _
      %p272 = scmp.lt.s32.totalorder %s17, 2
      // Predicated region
      $region33: #{tpu_custom_call.1} parent=5 // pred_check
        %p273 = pneg %p272
      $region34: #{tpu_custom_call.1} parent=5 // pred_check_branch
        %275 = sbr.rel (%p273) target = $region36
      $region35: #{tpu_custom_call.1} parent=5 // pred_region
        // Predicated region
        $region37: #{tpu_custom_call.1} parent=35 // pred_check
          %p276 = pneg %p49
        $region38: #{tpu_custom_call.1} parent=35 // pred_check_branch
          %278 = sbr.rel (%p276) target = $region40
        $region39: #{tpu_custom_call.1} parent=35 // pred_region
          %p279 = scmp.lt.s32.totalorder %s24, 1
          %s280 = scalar_select %p279, %s24, 1
          %s281 = smul.addr %s280, 4
          %s282 = scalar_lea.vmem %s0, %s281
        $region40: #{tpu_custom_call.1} parent=35 // pred_fallthru
          _
        // Predicated region
        $region41: #{tpu_custom_call.1} parent=35 // pred_check
          %p283 = pneg %p77
        $region42: #{tpu_custom_call.1} parent=35 // pred_check_branch
          %285 = sbr.rel (%p283) target = $region44
        $region43: #{tpu_custom_call.1} parent=35 // pred_region
          %p286 = scmp.lt.s32.totalorder %s24, 1
          %s287 = scalar_select %p286, %s24, 1
          %p288 = scmp.lt.s32.totalorder %s25, 0
          %s289 = scalar_select %p288, %s25, 0
          %s290 = sadd.s32 %s289, %s287
          %s291 = smul.addr %s290, 4
          %s292 = scalar_lea.vmem %s1, %s291
        $region44: #{tpu_custom_call.1} parent=35 // pred_fallthru
          _
        // Predicated region
        $region45: #{tpu_custom_call.1} parent=35 // pred_check
          %p293 = pneg %p103
        $region46: #{tpu_custom_call.1} parent=35 // pred_check_branch
          %295 = sbr.rel (%p293) target = $region48
        $region47: #{tpu_custom_call.1} parent=35 // pred_region
          %p296 = scmp.lt.s32.totalorder %s24, 1
          %s297 = scalar_select %p296, %s24, 1
          %s298 = smul.addr %s297, 4
          %s299 = scalar_lea.vmem %s2, %s298
        $region48: #{tpu_custom_call.1} parent=35 // pred_fallthru
          _
      $region36: #{tpu_custom_call.1} parent=5 // pred_fallthru
        _
      %p300 = scmp.le.s32.totalorder 1, %s17
      %p301 = scmp.lt.s32.totalorder %s17, 3
      %p302 = pnand %p300, %p301
      %p303 = pneg %p302
      // Predicated region
      $region49: #{tpu_custom_call.1} parent=5 // pred_check
        _
      $region50: #{tpu_custom_call.1} parent=5 // pred_check_branch
        %305 = sbr.rel (%p302) target = $region52
      $region51: #{tpu_custom_call.1} parent=5 // pred_region
        %s306 = ssub.s32 %s17, 1
        %p307 = scmp.lt.s32.totalorder %s26, 1
        %s308 = scalar_select %p307, %s26, 1
        %s309 = smul.addr %s308, 4
        %s310 = scalar_lea.vmem %s0, %s309
        %p311 = pneg %p55
        %p312 = pneg %p52
        %p313 = scmp.lt.s32.totalorder %s26, 1
        %s314 = scalar_select %p313, %s26, 1
        %p315 = scmp.lt.s32.totalorder %s27, 0
        %s316 = scalar_select %p315, %s27, 0
        %s317 = sadd.s32 %s316, %s314
        %s318 = smul.addr %s317, 4
        %s319 = scalar_lea.vmem %s1, %s318
        %p320 = pneg %p83
        %p321 = pneg %p80
        %p322 = scmp.lt.s32.totalorder %s26, 1
        %s323 = scalar_select %p322, %s26, 1
        %s324 = smul.addr %s323, 4
        %s325 = scalar_lea.vmem %s2, %s324
        %p326 = pneg %p109
        %p327 = pneg %p106
        %p328 = pneg %p130
        %p329 = pneg %p127
        %p330 = pneg %p151
        %p331 = pneg %p148
        %p332 = pneg %p172
        %p333 = pneg %p169
        %p334 = pneg %p193
        %p335 = pneg %p190
        %p336 = pneg %p214
        %p337 = pneg %p211
        %p338 = pneg %p242
        %p339 = pneg %p239
        %s340 = sand.u32 %s229, 1
        %s341 = scalar_lea.sflag [#allocation7], %s340
        %s342 = sand.u32 %s229, 1
        %s343 = smul.addr %s342, 8
        %s344 = scalar_lea.vmem [#allocation6], %s343
        %p345 = scmp.lt.s32.totalorder %s26, 1
        %s346 = scalar_select %p345, %s26, 1
        %s347 = smul.addr %s346, 4
        %s348 = scalar_lea.vmem %s0, %s347
        %p349 = scmp.lt.s32.totalorder %s26, 1
        %s350 = scalar_select %p349, %s26, 1
        %p351 = scmp.lt.s32.totalorder %s27, 0
        %s352 = scalar_select %p351, %s27, 0
        %s353 = sadd.s32 %s352, %s350
        %s354 = smul.addr %s353, 4
        %s355 = scalar_lea.vmem %s1, %s354
        %p356 = scmp.lt.s32.totalorder %s26, 1
        %s357 = scalar_select %p356, %s26, 1
        %s358 = smul.addr %s357, 4
        %s359 = scalar_lea.vmem %s2, %s358
        %p361 = scmp.eq.s32.totalorder %s27, 0
        // Predicated region
        $region53: #{tpu_custom_call.1} parent=51 // pred_check
          %p362 = pneg %p361
        $region54: #{tpu_custom_call.1} parent=51 // pred_check_branch
          %364 = sbr.rel (%p362) target = $region56
        $region55: #{tpu_custom_call.1} parent=51 // pred_region
          %v365 = vld [vmem:[%s348] sm:$0xf]
          %v366 = vld [vmem:[%s3] sm:$0xf]
          %v367 = vld [vmem:[%s3 + $0x4] sm:$0xf]
          %v368 = vld [vmem:[%s3 + $0x8] sm:$0xf]
          %v369 = vld [vmem:[%s3 + $0xc] sm:$0xf]
          %v374 = vunpack.c.l.b16 %v366
          %v375 = vunpack.c.l.b16 %v367
          %v376 = vunpack.c.l.b16 %v368
          %v377 = vunpack.c.l.b16 %v369
          %v378 = vpack.c.b16 %v375, %v374
          %v379 = vpack.c.b16 %v377, %v376
          %vm382 = vcmask 261120
          %v384 = vsel %vm382, %v365, 0
          %386 = vmatpush.bf16.msra.mxu0 0
          %387 = vmatpush.bf16.msra.mxu0 0
          %388 = vmatpush.bf16.msra.mxu0 0
          %389 = vmatpush.bf16.msra.mxu0 0
          %390 = vmatpush.bf16.msra.mxu0 0
          %391 = vmatpush.bf16.msra.mxu0 0
          %392 = vmatpush.bf16.msra.mxu0 %v379
          %393 = vmatpush.bf16.msra.mxu0 %v378
          %394 = vmatmul.bf16.gmra.mxu0 %v384
          %v395 = vpop.f32.mrf.mxu0
          %v396 = vadd.f32 0.0, %v395
          %v397 = vpop.f32.mrf.mxu0
          %398 = vdwg.mxu0
          %v399 = vpack.c.bf16 %v396, %v396
          %400 = vst [vmem:[#allocation2] sm:$0xf] %v399
          %v401 = vld [vmem:[%s359] sm:$0xf]
          %v402 = vld [vmem:[%s5] sm:$0xf]
          %v403 = vld [vmem:[%s5 + $0x4] sm:$0xf]
          %v404 = vld [vmem:[%s5 + $0x8] sm:$0xf]
          %v405 = vld [vmem:[%s5 + $0xc] sm:$0xf]
          %v410 = vunpack.c.l.b16 %v402
          %v411 = vunpack.c.l.b16 %v403
          %v412 = vunpack.c.l.b16 %v404
          %v413 = vunpack.c.l.b16 %v405
          %v414 = vpack.c.b16 %v411, %v410
          %v415 = vpack.c.b16 %v413, %v412
          %v419 = vsel %vm382, %v401, 0
          %421 = vmatpush.bf16.msra.mxu0 0
          %422 = vmatpush.bf16.msra.mxu0 0
          %423 = vmatpush.bf16.msra.mxu0 0
          %424 = vmatpush.bf16.msra.mxu0 0
          %425 = vmatpush.bf16.msra.mxu0 0
          %426 = vmatpush.bf16.msra.mxu0 0
          %427 = vmatpush.bf16.msra.mxu0 %v415
          %428 = vmatpush.bf16.msra.mxu0 %v414
          %429 = vmatmul.bf16.gmra.mxu0 %v419
          %v430 = vpop.f32.mrf.mxu0
          %v431 = vadd.f32 0.0, %v430
          %v432 = vpop.f32.mrf.mxu0
          %433 = vdwg.mxu0
          %v434 = vpack.c.bf16 %v431, %v431
          %435 = vst [vmem:[#allocation3] sm:$0xf] %v434
        $region56: #{tpu_custom_call.1} parent=51 // pred_fallthru
          _
        %v436 = vld [vmem:[%s355] sm:$0xf]
        %v437 = vld [vmem:[%s4] sm:$0xf]
        %v438 = vld [vmem:[%s4 + $0x4] sm:$0xf]
        %v439 = vld [vmem:[%s4 + $0x8] sm:$0xf]
        %v440 = vld [vmem:[%s4 + $0xc] sm:$0xf]
        %v445 = vunpack.c.l.b16 %v437
        %v446 = vunpack.c.l.b16 %v438
        %v447 = vunpack.c.l.b16 %v439
        %v448 = vunpack.c.l.b16 %v440
        %v449 = vpack.c.b16 %v446, %v445
        %v450 = vpack.c.b16 %v448, %v447
        %vm453 = vcmask 261120
        %v455 = vsel %vm453, %v436, 0
        %457 = vmatpush.bf16.msra.mxu0 0
        %458 = vmatpush.bf16.msra.mxu0 0
        %459 = vmatpush.bf16.msra.mxu0 0
        %460 = vmatpush.bf16.msra.mxu0 0
        %461 = vmatpush.bf16.msra.mxu0 0
        %462 = vmatpush.bf16.msra.mxu0 0
        %463 = vmatpush.bf16.msra.mxu0 %v450
        %464 = vmatpush.bf16.msra.mxu0 %v449
        %465 = vmatmul.bf16.gmra.mxu0 %v455
        %v466 = vpop.f32.mrf.mxu0
        %v467 = vadd.f32 0.0, %v466
        %v468 = vpop.f32.mrf.mxu0
        %469 = vdwg.mxu0
        %v470 = vpack.c.bf16 %v467, %v467
        %471 = vst [vmem:[#allocation4] sm:$0xf] %v470
        %v472 = vld [vmem:[#allocation4] sm:$0xf]
        %v473 = vld [vmem:[#allocation2] sm:$0xf]
        %v474 = vld [vmem:[#allocation3] sm:$0xf]
        %v476 = vsel %vm453, %v472, 0
        %v479 = vsel %vm453, %v473, 0
        %481 = vmatpush.bf16.xpose.msra.mxu0 0
        %482 = vmatpush.bf16.xpose.msra.mxu0 0
        %483 = vmatpush.bf16.xpose.msra.mxu0 0
        %484 = vmatpush.bf16.xpose.msra.mxu0 0
        %485 = vmatpush.bf16.xpose.msra.mxu0 0
        %486 = vmatpush.bf16.xpose.msra.mxu0 0
        %487 = vmatpush.bf16.xpose.msra.mxu0 0
        %488 = vmatpush.bf16.xpose.msra.mxu0 %v479
        %489 = vmatmul.bf16.gmra.mxu0 %v476
        %v490 = vpop.f32.mrf.mxu0
        %v491 = vadd.f32 0.0, %v490
        %v492 = vpop.f32.mrf.mxu0
        %493 = vdwg.mxu0
        %vm494 = vcmask 64512
        %v495 = vsel %vm494, %v491, -inf
        %496 = vmax.xlane.f32.xlu0 %v495
        %v497 = vpop.xlane.xlu0 %496
        %v498 = vsub.f32 %v491, %v497
        %v499 = vmul.f32 %v498, 1.442695
        %v500 = vpow.pop %v499
        %v501 = vsel %vm494, %v500, 0.0
        %502 = vadd.xlane.f32.xlu0 %v501
        %v503 = vpop.xlane.xlu0 %502
        %v504 = vpack.c.bf16 %v500, %v500
        %v506 = vsel %vm494, %v504, 0
        %vm508 = vcmask 1043456
        %v510 = vsel %vm508, %v474, 0
        %512 = vmatpush.bf16.msra.mxu0 0
        %513 = vmatpush.bf16.msra.mxu0 0
        %514 = vmatpush.bf16.msra.mxu0 0
        %515 = vmatpush.bf16.msra.mxu0 0
        %516 = vmatpush.bf16.msra.mxu0 0
        %517 = vmatpush.bf16.msra.mxu0 0
        %518 = vmatpush.bf16.msra.mxu0 0
        %519 = vmatpush.bf16.msra.mxu0 %v510
        %520 = vmatmul.bf16.gmra.mxu0 %v506
        %v521 = vpop.f32.mrf.mxu0
        %v522 = vadd.f32 0.0, %v521
        %v523 = vpop.f32.mrf.mxu0
        %524 = vdwg.mxu0
        %v525 = vrcp.pop %v503
        %v526 = vmul.f32 %v522, %v525
        %v527 = vpack.c.bf16 %v526, %v526
        %vm528 = vcmask 257024
        %529 = vst.msk [vmem:[#allocation5] sm:$0xf] %vm528, %v527
        %v530 = vld [vmem:[#allocation4] sm:$0xf]
        %v531 = vld [vmem:[#allocation2] sm:$0xf]
        %v532 = vld [vmem:[#allocation3] sm:$0xf]
        %v534 = vunpack.c.l.b16 %v530
        %v535 = vpack.c.b16 %v534, %v534
        %536 = vrot.lane.b32.xlu0 %v535, 96
        %v537 = vpop.permute.xlu0 %536
        %v539 = vunpack.c.l.b16 %v531
        %v540 = vpack.c.b16 %v539, %v539
        %541 = vrot.lane.b32.xlu0 %v540, 96
        %v542 = vpop.permute.xlu0 %541
        %v544 = vsel %vm453, %v537, 0
        %v547 = vsel %vm453, %v542, 0
        %549 = vmatpush.bf16.xpose.msra.mxu0 0
        %550 = vmatpush.bf16.xpose.msra.mxu0 0
        %551 = vmatpush.bf16.xpose.msra.mxu0 0
        %552 = vmatpush.bf16.xpose.msra.mxu0 0
        %553 = vmatpush.bf16.xpose.msra.mxu0 0
        %554 = vmatpush.bf16.xpose.msra.mxu0 0
        %555 = vmatpush.bf16.xpose.msra.mxu0 0
        %556 = vmatpush.bf16.xpose.msra.mxu0 %v547
        %557 = vmatmul.bf16.gmra.mxu0 %v544
        %v558 = vpop.f32.mrf.mxu0
        %v559 = vadd.f32 0.0, %v558
        %v560 = vpop.f32.mrf.mxu0
        %561 = vdwg.mxu0
        %v562 = vsel %vm494, %v559, -inf
        %563 = vmax.xlane.f32.xlu0 %v562
        %v564 = vpop.xlane.xlu0 %563
        %v565 = vsub.f32 %v559, %v564
        %v566 = vmul.f32 %v565, 1.442695
        %v567 = vpow.pop %v566
        %v568 = vsel %vm494, %v567, 0.0
        %569 = vadd.xlane.f32.xlu0 %v568
        %v570 = vpop.xlane.xlu0 %569
        %v571 = vpack.c.bf16 %v567, %v567
        %v573 = vunpack.c.l.b16 %v532
        %v574 = vpack.c.b16 %v573, %v573
        %575 = vrot.lane.b32.xlu0 %v574, 96
        %v576 = vpop.permute.xlu0 %575
        %v578 = vsel %vm494, %v571, 0
        %v581 = vsel %vm508, %v576, 0
        %583 = vmatpush.bf16.msra.mxu0 0
        %584 = vmatpush.bf16.msra.mxu0 0
        %585 = vmatpush.bf16.msra.mxu0 0
        %586 = vmatpush.bf16.msra.mxu0 0
        %587 = vmatpush.bf16.msra.mxu0 0
        %588 = vmatpush.bf16.msra.mxu0 0
        %589 = vmatpush.bf16.msra.mxu0 0
        %590 = vmatpush.bf16.msra.mxu0 %v581
        %591 = vmatmul.bf16.gmra.mxu0 %v578
        %v592 = vpop.f32.mrf.mxu0
        %v593 = vadd.f32 0.0, %v592
        %v594 = vpop.f32.mrf.mxu0
        %595 = vdwg.mxu0
        %v596 = vrcp.pop %v570
        %v597 = vmul.f32 %v593, %v596
        %v598 = vpack.c.bf16 %v597, %v597
        %600 = vrot.lane.b32.xlu0 %v598, 32
        %v601 = vpop.permute.xlu0 %600
        %vm603 = vcmask 519424
        %604 = vst.msk [vmem:[#allocation5] sm:$0xf] %vm603, %v601
        %v605 = vld [vmem:[#allocation4] sm:$0xf]
        %v606 = vld [vmem:[#allocation2] sm:$0xf]
        %v607 = vld [vmem:[#allocation3] sm:$0xf]
        %v609 = vunpack.c.l.b16 %v605
        %v610 = vpack.c.b16 %v609, %v609
        %611 = vrot.lane.b32.xlu0 %v610, 64
        %v612 = vpop.permute.xlu0 %611
        %v614 = vunpack.c.l.b16 %v606
        %v615 = vpack.c.b16 %v614, %v614
        %616 = vrot.lane.b32.xlu0 %v615, 64
        %v617 = vpop.permute.xlu0 %616
        %v619 = vsel %vm453, %v612, 0
        %v622 = vsel %vm453, %v617, 0
        %624 = vmatpush.bf16.xpose.msra.mxu0 0
        %625 = vmatpush.bf16.xpose.msra.mxu0 0
        %626 = vmatpush.bf16.xpose.msra.mxu0 0
        %627 = vmatpush.bf16.xpose.msra.mxu0 0
        %628 = vmatpush.bf16.xpose.msra.mxu0 0
        %629 = vmatpush.bf16.xpose.msra.mxu0 0
        %630 = vmatpush.bf16.xpose.msra.mxu0 0
        %631 = vmatpush.bf16.xpose.msra.mxu0 %v622
        %632 = vmatmul.bf16.gmra.mxu0 %v619
        %v633 = vpop.f32.mrf.mxu0
        %v634 = vadd.f32 0.0, %v633
        %v635 = vpop.f32.mrf.mxu0
        %636 = vdwg.mxu0
        %v637 = vsel %vm494, %v634, -inf
        %638 = vmax.xlane.f32.xlu0 %v637
        %v639 = vpop.xlane.xlu0 %638
        %v640 = vsub.f32 %v634, %v639
        %v641 = vmul.f32 %v640, 1.442695
        %v642 = vpow.pop %v641
        %v643 = vsel %vm494, %v642, 0.0
        %644 = vadd.xlane.f32.xlu0 %v643
        %v645 = vpop.xlane.xlu0 %644
        %v646 = vpack.c.bf16 %v642, %v642
        %v648 = vunpack.c.l.b16 %v607
        %v649 = vpack.c.b16 %v648, %v648
        %650 = vrot.lane.b32.xlu0 %v649, 64
        %v651 = vpop.permute.xlu0 %650
        %v653 = vsel %vm494, %v646, 0
        %v656 = vsel %vm508, %v651, 0
        %658 = vmatpush.bf16.msra.mxu0 0
        %659 = vmatpush.bf16.msra.mxu0 0
        %660 = vmatpush.bf16.msra.mxu0 0
        %661 = vmatpush.bf16.msra.mxu0 0
        %662 = vmatpush.bf16.msra.mxu0 0
        %663 = vmatpush.bf16.msra.mxu0 0
        %664 = vmatpush.bf16.msra.mxu0 0
        %665 = vmatpush.bf16.msra.mxu0 %v656
        %666 = vmatmul.bf16.gmra.mxu0 %v653
        %v667 = vpop.f32.mrf.mxu0
        %v668 = vadd.f32 0.0, %v667
        %v669 = vpop.f32.mrf.mxu0
        %670 = vdwg.mxu0
        %v671 = vrcp.pop %v645
        %v672 = vmul.f32 %v668, %v671
        %v673 = vpack.c.bf16 %v672, %v672
        %675 = vrot.lane.b32.xlu0 %v673, 64
        %v676 = vpop.permute.xlu0 %675
        %vm678 = vcmask 781824
        %679 = vst.msk [vmem:[#allocation5] sm:$0xf] %vm678, %v676
        %v680 = vld [vmem:[#allocation4] sm:$0xf]
        %v681 = vld [vmem:[#allocation2] sm:$0xf]
        %v682 = vld [vmem:[#allocation3] sm:$0xf]
        %v684 = vunpack.c.l.b16 %v680
        %v685 = vpack.c.b16 %v684, %v684
        %686 = vrot.lane.b32.xlu0 %v685, 32
        %v687 = vpop.permute.xlu0 %686
        %v689 = vunpack.c.l.b16 %v681
        %v690 = vpack.c.b16 %v689, %v689
        %691 = vrot.lane.b32.xlu0 %v690, 32
        %v692 = vpop.permute.xlu0 %691
        %v694 = vsel %vm453, %v687, 0
        %v697 = vsel %vm453, %v692, 0
        %699 = vmatpush.bf16.xpose.msra.mxu0 0
        %700 = vmatpush.bf16.xpose.msra.mxu0 0
        %701 = vmatpush.bf16.xpose.msra.mxu0 0
        %702 = vmatpush.bf16.xpose.msra.mxu0 0
        %703 = vmatpush.bf16.xpose.msra.mxu0 0
        %704 = vmatpush.bf16.xpose.msra.mxu0 0
        %705 = vmatpush.bf16.xpose.msra.mxu0 0
        %706 = vmatpush.bf16.xpose.msra.mxu0 %v697
        %707 = vmatmul.bf16.gmra.mxu0 %v694
        %v708 = vpop.f32.mrf.mxu0
        %v709 = vadd.f32 0.0, %v708
        %v710 = vpop.f32.mrf.mxu0
        %711 = vdwg.mxu0
        %v712 = vsel %vm494, %v709, -inf
        %713 = vmax.xlane.f32.xlu0 %v712
        %v714 = vpop.xlane.xlu0 %713
        %v715 = vsub.f32 %v709, %v714
        %v716 = vmul.f32 %v715, 1.442695
        %v717 = vpow.pop %v716
        %v718 = vsel %vm494, %v717, 0.0
        %719 = vadd.xlane.f32.xlu0 %v718
        %v720 = vpop.xlane.xlu0 %719
        %v721 = vpack.c.bf16 %v717, %v717
        %v723 = vunpack.c.l.b16 %v682
        %v724 = vpack.c.b16 %v723, %v723
        %725 = vrot.lane.b32.xlu0 %v724, 32
        %v726 = vpop.permute.xlu0 %725
        %v728 = vsel %vm494, %v721, 0
        %v731 = vsel %vm508, %v726, 0
        %733 = vmatpush.bf16.msra.mxu0 0
        %734 = vmatpush.bf16.msra.mxu0 0
        %735 = vmatpush.bf16.msra.mxu0 0
        %736 = vmatpush.bf16.msra.mxu0 0
        %737 = vmatpush.bf16.msra.mxu0 0
        %738 = vmatpush.bf16.msra.mxu0 0
        %739 = vmatpush.bf16.msra.mxu0 0
        %740 = vmatpush.bf16.msra.mxu0 %v731
        %741 = vmatmul.bf16.gmra.mxu0 %v728
        %v742 = vpop.f32.mrf.mxu0
        %v743 = vadd.f32 0.0, %v742
        %v744 = vpop.f32.mrf.mxu0
        %745 = vdwg.mxu0
        %v746 = vrcp.pop %v720
        %v747 = vmul.f32 %v743, %v746
        %v748 = vpack.c.bf16 %v747, %v747
        %750 = vrot.lane.b32.xlu0 %v748, 96
        %v751 = vpop.permute.xlu0 %750
        %vm753 = vcmask 1044224
        %754 = vst.msk [vmem:[#allocation5] sm:$0xf] %vm753, %v751
        %v755 = vld [vmem:[#allocation5] sm:$0xf]
        %v756 = vld [vmem:[%s6] sm:$0xf]
        %v757 = vld [vmem:[%s6 + $0x4] sm:$0xf]
        %v758 = vld [vmem:[%s6 + $0x8] sm:$0xf]
        %v759 = vld [vmem:[%s6 + $0xc] sm:$0xf]
        %v760 = vld [vmem:[%s6 + $0x10] sm:$0xf]
        %v761 = vld [vmem:[%s6 + $0x14] sm:$0xf]
        %v762 = vld [vmem:[%s6 + $0x18] sm:$0xf]
        %v763 = vld [vmem:[%s6 + $0x1c] sm:$0xf]
        %v764 = vld [vmem:[%s6 + $0x20] sm:$0xf]
        %v765 = vld [vmem:[%s6 + $0x24] sm:$0xf]
        %v766 = vld [vmem:[%s6 + $0x28] sm:$0xf]
        %v767 = vld [vmem:[%s6 + $0x2c] sm:$0xf]
        %v768 = vld [vmem:[%s6 + $0x30] sm:$0xf]
        %v769 = vld [vmem:[%s6 + $0x34] sm:$0xf]
        %v770 = vld [vmem:[%s6 + $0x38] sm:$0xf]
        %v771 = vld [vmem:[%s6 + $0x3c] sm:$0xf]
        %v772 = vld [vmem:[%s7] sm:$0x1]
        %v774 = vperm.slane %v772, 0
        %v792 = vunpack.c.l.b16 %v756
        %v793 = vunpack.c.l.b16 %v757
        %v794 = vunpack.c.l.b16 %v758
        %v795 = vunpack.c.l.b16 %v759
        %v796 = vunpack.c.l.b16 %v760
        %v797 = vunpack.c.l.b16 %v761
        %v798 = vunpack.c.l.b16 %v762
        %v799 = vunpack.c.l.b16 %v763
        %v800 = vunpack.c.l.b16 %v764
        %v801 = vunpack.c.l.b16 %v765
        %v802 = vunpack.c.l.b16 %v766
        %v803 = vunpack.c.l.b16 %v767
        %v804 = vunpack.c.l.b16 %v768
        %v805 = vunpack.c.l.b16 %v769
        %v806 = vunpack.c.l.b16 %v770
        %v807 = vunpack.c.l.b16 %v771
        %v808 = vpack.c.b16 %v793, %v792
        %v809 = vpack.c.b16 %v795, %v794
        %v810 = vpack.c.b16 %v797, %v796
        %v811 = vpack.c.b16 %v799, %v798
        %v812 = vpack.c.b16 %v801, %v800
        %v813 = vpack.c.b16 %v803, %v802
        %v814 = vpack.c.b16 %v805, %v804
        %v815 = vpack.c.b16 %v807, %v806
        %824 = vmatpush.bf16.msra.mxu0 %v815
        %825 = vmatpush.bf16.msra.mxu0 %v814
        %826 = vmatpush.bf16.msra.mxu0 %v813
        %827 = vmatpush.bf16.msra.mxu0 %v812
        %828 = vmatpush.bf16.msra.mxu0 %v811
        %829 = vmatpush.bf16.msra.mxu0 %v810
        %830 = vmatpush.bf16.msra.mxu0 %v809
        %831 = vmatpush.bf16.msra.mxu0 %v808
        %832 = vmatmul.bf16.gmra.mxu0 %v755
        %v833 = vpop.f32.mrf.mxu0
        %v834 = vadd.f32 %v774, %v833
        %v835 = vpop.f32.mrf.mxu0
        %836 = vdwg.mxu0
        %837 = vst.msk [vmem:[%s344] sm:$0xff] %vm453, %v834
        %s838 = sand.u32 %s229, 1
        %s839 = scalar_lea.sflag [#allocation7], %s838
        %s840 = sand.u32 %s229, 1
        %s841 = smul.addr %s840, 8
        %s842 = scalar_lea.vmem [#allocation6], %s841
        // Predicated region
        $region57: #{tpu_custom_call.1} parent=51 // pred_check
          %p843 = pneg %p239
        $region58: #{tpu_custom_call.1} parent=51 // pred_check_branch
          %845 = sbr.rel (%p843) target = $region60
        $region59: #{tpu_custom_call.1} parent=51 // pred_region
          %847 = vsyncadd %s839, 0
          %s848 = sadd.s32 %s27, %s26
          %s849 = smul.addr %s848, 8
          %s850 = scalar_lea.hbm %s8, %s849
          %s852 = sshll.u32 %s842, 4
          %s853 = int_to_ptr.vmem [resolvable:$true] %s852
          %s854 = sshll.u32 %s850, 4
          %s855 = int_to_ptr.hbm [resolvable:$true] %s854
          %857 = dma.vmem_to_hbm [thread:$0]  %s853, 128, %s855, %s839
        $region60: #{tpu_custom_call.1} parent=51 // pred_fallthru
          _
      $region52: #{tpu_custom_call.1} parent=5 // pred_fallthru
        _
      %p858 = scmp.le.s32.totalorder 2, %s17
      // Predicated region
      $region61: #{tpu_custom_call.1} parent=5 // pred_check
        %p859 = pneg %p858
      $region62: #{tpu_custom_call.1} parent=5 // pred_check_branch
        %861 = sbr.rel (%p859) target = $region64
      $region63: #{tpu_custom_call.1} parent=5 // pred_region
        %s862 = ssub.s32 %s17, 2
        // Predicated region
        $region65: #{tpu_custom_call.1} parent=63 // pred_check
          %p863 = pneg %p245
        $region66: #{tpu_custom_call.1} parent=63 // pred_check_branch
          %865 = sbr.rel (%p863) target = $region68
        $region67: #{tpu_custom_call.1} parent=63 // pred_region
          %s866 = sand.u32 %s230, 1
          %s867 = scalar_lea.sflag [#allocation7], %s866
          %s868 = sand.u32 %s230, 1
          %s869 = smul.addr %s868, 8
          %s870 = scalar_lea.vmem [#allocation6], %s869
          %872 = dma.done %s867, 128
        $region68: #{tpu_custom_call.1} parent=63 // pred_fallthru
          _
      $region64: #{tpu_custom_call.1} parent=5 // pred_fallthru
        _
    $region6: #{tpu_custom_call.1} parent=1 // loop_footer
      %s21 = sadd.s32 1, %s17
    $region7: #{tpu_custom_call.1} parent=1 // loop_footer_branch
      %16 = sbr.rel target = $region3
    $region8: #{tpu_custom_call.1} parent=1 // loop_exit
      _
    %873 = vsyncpa [#allocation7], 1
    %s874 = scalar_lea.sflag [#allocation7], 1
    %875 = vsyncpa %s874, 1

</llo_original>
